<compile_context>
chip_gen: v7x
topology: tpu7x:2x2x1
jax: 0.10.0
libtpu: 0.0.40
codegen_flags: <defaults>
</compile_context>

<pallas_src>
import functools

import jax
import jax.numpy as jnp
from jax import lax
from jax.experimental import pallas as pl
from jax.experimental.pallas import tpu as pltpu

EPS = 1e-5                    # nn.GroupNorm default
MXU_DTYPE = jnp.bfloat16      # MXU operand dtype (v6e/v7x fast path); f32 accum


# --------------------------------------------------------------------------
# Fused kernel: one batch element per grid step, everything resident in VMEM.
# --------------------------------------------------------------------------
def _resnet_block_kernel(t_ref, wfc_ref, bfc_ref, x_ref,
                         w1_ref, b1_ref, g1_ref, bt1_ref,
                         w2_ref, b2_ref, g2_ref, bt2_ref,
                         gmat_ref, *rest,
                         H, W, Cout, groups, has_res_conv):
    if has_res_conv:
        wres_ref, bres_ref, out_ref = rest
    else:
        (out_ref,) = rest
    f32 = jnp.float32

    # Exact 0/1 row-shift matrices (built once per step from iota, cheap VPU):
    #   (s_down @ y)[h] = y[h-1] (0 at h=0),  (s_up @ y)[h] = y[h+1] (0 at h=H-1).
    ri = lax.broadcasted_iota(jnp.int32, (H, H), 0)
    ci = lax.broadcasted_iota(jnp.int32, (H, H), 1)
    s_down = (ci == ri - 1).astype(f32)
    s_up = (ci == ri + 1).astype(f32)

    # ---- time embedding: te = silu(t[b]) @ W_fc + b_fc (W_fc pre-tiled to W*Cin lanes)
    b = pl.program_id(0)
    ts = jax.nn.silu(t_ref[pl.ds(b, 1), :].astype(f32))                  # (1, Td)
    te = jnp.dot(ts, wfc_ref[...], preferred_element_type=f32) + bfc_ref[...]

    x = x_ref[0].astype(f32)                                             # (H, W*Cin)
    h = x + te                                                           # broadcast over H

    def conv3x3(v, w_ref_, b_ref_):
        # v: (H, W*Cin_conv) -> (H, W*Cout).  Banded block weights absorb the
        # horizontal taps and the zero padding; row-shift matmuls handle dy.
        vb = v.astype(MXU_DTYPE)
        y0 = jnp.dot(vb, w_ref_[0], preferred_element_type=f32)          # dy = 0
        y1 = jnp.dot(vb, w_ref_[1], preferred_element_type=f32)          # dy = 1
        y2 = jnp.dot(vb, w_ref_[2], preferred_element_type=f32)          # dy = 2
        out = (jnp.dot(s_down, y0, preferred_element_type=f32) + y1
               + jnp.dot(s_up, y2, preferred_element_type=f32))
        return out + b_ref_[...]

    inv_n = 1.0 / float(H * W * (Cout // groups))                        # constant multiply, no divide

    def group_norm_silu(v, g_ref_, bt_ref_):
        # Two-pass (centered) GroupNorm in the flat layout, f32 throughout.
        s = jnp.sum(v, axis=0, keepdims=True)                            # (1, W*Cout)  XLU reduce
        mean = jnp.dot(s, gmat_ref[...], preferred_element_type=f32) * inv_n
        d = v - mean
        ssd = jnp.sum(d * d, axis=0, keepdims=True)
        var = jnp.dot(ssd, gmat_ref[...], preferred_element_type=f32) * inv_n
        y = d * lax.rsqrt(var + EPS) * g_ref_[...] + bt_ref_[...]
        return y * jax.nn.sigmoid(y)                                     # SiLU (EUP)

    h = group_norm_silu(conv3x3(h, w1_ref, b1_ref), g1_ref, bt1_ref)
    h = group_norm_silu(conv3x3(h, w2_ref, b2_ref), g2_ref, bt2_ref)

    if has_res_conv:                                                     # 1x1 conv skip
        r = (jnp.dot(x.astype(MXU_DTYPE), wres_ref[...],
                     preferred_element_type=f32) + bres_ref[...])
    else:                                                                # identity skip (free)
        r = x
    out_ref[0] = (h + r).astype(out_ref.dtype)


# --------------------------------------------------------------------------
# Host-side, one-time parameter re-layout (lane folding + bf16 cast).
# --------------------------------------------------------------------------
def prepare_params(raw, W, groups):
    def tile_w(v):                      # (C,) -> (1, W*C): lane w*C + c holds v[c]
        return jnp.tile(jnp.asarray(v, jnp.float32).reshape(1, -1), (1, W))

    def band(w_hwio):                   # (3,3,ci,co) -> (3, W*ci, W*co) banded blocks
        _, _, ci, co = w_hwio.shape
        mats = []
        for dy in range(3):
            m = jnp.zeros((W * ci, W * co), jnp.float32)
            for dx in range(3):
                # output column w reads input column w' = w + dx - 1
                m = m + jnp.kron(jnp.eye(W, k=1 - dx, dtype=jnp.float32),
                                 w_hwio[dy, dx].astype(jnp.float32))
            mats.append(m)
        return jnp.stack(mats, axis=0).astype(MXU_DTYPE)

    cout = raw["w1"].shape[3]
    cpg = cout // groups
    gid = (jnp.arange(W * cout) % cout) // cpg
    gmat = (gid[:, None] == gid[None, :]).astype(jnp.float32)            # flat group membership

    fp = {
        "w_fc": jnp.tile(jnp.asarray(raw["w_fc"], jnp.float32), (1, W)),
        "b_fc": tile_w(raw["b_fc"]),
        "w1": band(raw["w1"]), "b1": tile_w(raw["b1"]),
        "g1": tile_w(raw["g1"]), "bt1": tile_w(raw["bt1"]),
        "w2": band(raw["w2"]), "b2": tile_w(raw["b2"]),
        "g2": tile_w(raw["g2"]), "bt2": tile_w(raw["bt2"]),
        "gmat": gmat,
    }
    if "w_res" in raw:
        fp["w_res"] = jnp.kron(jnp.eye(W, dtype=jnp.float32),
                               jnp.asarray(raw["w_res"], jnp.float32)).astype(MXU_DTYPE)
        fp["b_res"] = tile_w(raw["b_res"])
    return fp


# --------------------------------------------------------------------------
# Public forward: accepts the PyTorch NCHW layout.
# --------------------------------------------------------------------------
@functools.partial(jax.jit, static_argnames=("groups",))
def resnet_block_forward(x_nchw, t, fp, groups=4):
    B, Cin, H, W = x_nchw.shape
    Cout = fp["b1"].shape[1] // W
    Td = t.shape[1]
    has_res_conv = "w_res" in fp

    # NCHW -> NHWC -> lane-folded (B, H, W*Cin).  Boundary transposes kept only
    # to preserve the PyTorch interface; an NHWC model would drop them.
    x_flat = jnp.transpose(x_nchw, (0, 2, 3, 1)).reshape(B, H, W * Cin)

    kernel = functools.partial(_resnet_block_kernel, H=H, W=W, Cout=Cout,
                               groups=groups, has_res_conv=has_res_conv)

    const2 = lambda shape: pl.BlockSpec(shape, lambda b: (0, 0))
    in_specs = [
        pl.BlockSpec((B, Td), lambda b: (0, 0)),                         # t
        const2((Td, W * Cin)),                                           # w_fc (tiled)
        const2((1, W * Cin)),                                            # b_fc
        pl.BlockSpec((1, H, W * Cin), lambda b: (b, 0, 0)),              # x
        pl.BlockSpec((3, W * Cin, W * Cout), lambda b: (0, 0, 0)),       # conv1 band weights
        const2((1, W * Cout)), const2((1, W * Cout)), const2((1, W * Cout)),
        pl.BlockSpec((3, W * Cout, W * Cout), lambda b: (0, 0, 0)),      # conv2 band weights
        const2((1, W * Cout)), const2((1, W * Cout)), const2((1, W * Cout)),
        const2((W * Cout, W * Cout)),                                    # group matrix
    ]
    args = [t, fp["w_fc"], fp["b_fc"], x_flat,
            fp["w1"], fp["b1"], fp["g1"], fp["bt1"],
            fp["w2"], fp["b2"], fp["g2"], fp["bt2"], fp["gmat"]]
    if has_res_conv:
        in_specs += [const2((W * Cin, W * Cout)), const2((1, W * Cout))]
        args += [fp["w_res"], fp["b_res"]]

    out_flat = pl.pallas_call(
        kernel,
        out_shape=jax.ShapeDtypeStruct((B, H, W * Cout), jnp.float32),
        grid=(B,),
        in_specs=in_specs,
        out_specs=pl.BlockSpec((1, H, W * Cout), lambda b: (b, 0, 0)),
        compiler_params=pltpu.CompilerParams(
            dimension_semantics=("parallel",),
            vmem_limit_bytes=32 * 1024 * 1024),
    )(*args)

    out = out_flat.reshape(B, H, W, Cout)
    return jnp.transpose(out, (0, 3, 1, 2))                              # NHWC -> NCHW


# --------------------------------------------------------------------------
# Pure-JAX reference (same bf16 MXU-operand precision as the kernel).
# --------------------------------------------------------------------------
def resnet_block_ref(x_nchw, t, raw, groups=4):
    x = jnp.transpose(x_nchw, (0, 2, 3, 1)).astype(jnp.float32)
    te = jax.nn.silu(t) @ raw["w_fc"] + raw["b_fc"]
    xt = x + te[:, None, None, :]

    def conv3x3(h, w, b):
        y = lax.conv_general_dilated(h.astype(MXU_DTYPE), w.astype(MXU_DTYPE),
                                     (1, 1), "SAME",
                                     dimension_numbers=("NHWC", "HWIO", "NHWC"),
                                     preferred_element_type=jnp.float32)
        return y + b.reshape(1, 1, 1, -1)

    def gn_silu(y, gamma, beta):
        Bq, Hq, Wq, C = y.shape
        cpg = C // groups
        yr = y.reshape(Bq, Hq, Wq, groups, cpg)
        mean = yr.mean(axis=(1, 2, 4), keepdims=True)
        var = ((yr - mean) ** 2).mean(axis=(1, 2, 4), keepdims=True)
        yn = ((yr - mean) / jnp.sqrt(var + EPS)).reshape(Bq, Hq, Wq, C)
        yn = yn * gamma.reshape(1, 1, 1, C) + beta.reshape(1, 1, 1, C)
        return jax.nn.silu(yn)

    h = gn_silu(conv3x3(xt, raw["w1"], raw["b1"]), raw["g1"], raw["bt1"])
    h = gn_silu(conv3x3(h, raw["w2"], raw["b2"]), raw["g2"], raw["bt2"])
    if "w_res" in raw:
        Bq, Hq, Wq, Cin = x.shape
        r = jnp.dot(x.reshape(-1, Cin).astype(MXU_DTYPE),
                    raw["w_res"].astype(MXU_DTYPE),
                    preferred_element_type=jnp.float32)
        r = r.reshape(Bq, Hq, Wq, -1) + raw["b_res"]
    else:
        r = x
    return jnp.transpose(h + r, (0, 3, 1, 2))


# --------------------------------------------------------------------------
if __name__ == "__main__":
    def make_raw_params(key, Cin, Cout, Td):
        ks = jax.random.split(key, 12)

        def rnd(k, shape, scale=0.1):
            return (scale * jax.random.normal(k, shape)).astype(jnp.float32)

        raw = {
            "w_fc": rnd(ks[0], (Td, Cin)),
            "b_fc": rnd(ks[1], (Cin,)),
            "w1": rnd(ks[2], (3, 3, Cin, Cout)),
            "b1": rnd(ks[3], (Cout,)),
            "g1": 1.0 + rnd(ks[4], (Cout,)),
            "bt1": rnd(ks[5], (Cout,)),
            "w2": rnd(ks[6], (3, 3, Cout, Cout)),
            "b2": rnd(ks[7], (Cout,)),
            "g2": 1.0 + rnd(ks[8], (Cout,)),
            "bt2": rnd(ks[9], (Cout,)),
        }
        if Cin != Cout:
            raw["w_res"] = rnd(ks[10], (Cin, Cout))
            raw["b_res"] = rnd(ks[11], (Cout,))
        return raw

    def run_case(seed, B, Cin, Cout, H, W, Td, groups):
        kp, kx, kt = jax.random.split(jax.random.PRNGKey(seed), 3)
        raw = make_raw_params(kp, Cin, Cout, Td)
        fp = prepare_params(raw, W, groups)
        x = jax.random.normal(kx, (B, Cin, H, W), dtype=jnp.float32)   # NCHW like PyTorch
        t = jax.random.normal(kt, (B, Td), dtype=jnp.float32)

        out = jax.block_until_ready(resnet_block_forward(x, t, fp, groups=groups))
        ref = jax.block_until_ready(resnet_block_ref(x, t, raw, groups=groups))
        assert out.shape == (B, Cout, H, W)
        err = float(jnp.max(jnp.abs(out - ref)))
        assert err < 1e-2, err      # bf16 MXU operands, f32 accumulation

    # conv_res (1x1) skip path — main shapes
    run_case(0, B=2, Cin=4, Cout=8, H=16, W=16, Td=32, groups=4)
    # identity skip path (Cin == Cout)
    run_case(1, B=2, Cin=8, Cout=8, H=8, W=8, Td=16, groups=4)

    print("KERNEL_OK")
</pallas_src>

<mosaic_0001>
module attributes {stable_mosaic.version = 11 : i64} {
  func.func @_resnet_block_kernel(%arg0: i32, %arg1: memref<2x32xf32, #tpu.memory_space<vmem>>, %arg2: memref<32x64xf32, #tpu.memory_space<vmem>>, %arg3: memref<1x64xf32, #tpu.memory_space<vmem>>, %arg4: memref<1x16x64xf32, #tpu.memory_space<vmem>>, %arg5: memref<3x64x128xbf16, #tpu.memory_space<vmem>>, %arg6: memref<1x128xf32, #tpu.memory_space<vmem>>, %arg7: memref<1x128xf32, #tpu.memory_space<vmem>>, %arg8: memref<1x128xf32, #tpu.memory_space<vmem>>, %arg9: memref<3x128x128xbf16, #tpu.memory_space<vmem>>, %arg10: memref<1x128xf32, #tpu.memory_space<vmem>>, %arg11: memref<1x128xf32, #tpu.memory_space<vmem>>, %arg12: memref<1x128xf32, #tpu.memory_space<vmem>>, %arg13: memref<128x128xf32, #tpu.memory_space<vmem>>, %arg14: memref<64x128xbf16, #tpu.memory_space<vmem>>, %arg15: memref<1x128xf32, #tpu.memory_space<vmem>>, %arg16: memref<1x16x128xf32, #tpu.memory_space<vmem>>) attributes {dimension_semantics = [#tpu.dimension_semantics<parallel>], iteration_bounds = array<i64: 2>, scalar_prefetch = 0 : i64, scratch_operands = 0 : i64, tpu.core_type = #tpu.core_type<tc>, window_params = [{pipeline_mode = #tpu.pipeline_mode<synchronous>, transform_indices = @transform_0, window_bounds = array<i64: 2, 32>}, {pipeline_mode = #tpu.pipeline_mode<synchronous>, transform_indices = @transform_1, window_bounds = array<i64: 32, 64>}, {pipeline_mode = #tpu.pipeline_mode<synchronous>, transform_indices = @transform_2, window_bounds = array<i64: 1, 64>}, {transform_indices = @transform_3, window_bounds = array<i64: 1, 16, 64>}, {pipeline_mode = #tpu.pipeline_mode<synchronous>, transform_indices = @transform_4, window_bounds = array<i64: 3, 64, 128>}, {pipeline_mode = #tpu.pipeline_mode<synchronous>, transform_indices = @transform_5, window_bounds = array<i64: 1, 128>}, {pipeline_mode = #tpu.pipeline_mode<synchronous>, transform_indices = @transform_6, window_bounds = array<i64: 1, 128>}, {pipeline_mode = #tpu.pipeline_mode<synchronous>, transform_indices = @transform_7, window_bounds = array<i64: 1, 128>}, {pipeline_mode = #tpu.pipeline_mode<synchronous>, transform_indices = @transform_8, window_bounds = array<i64: 3, 128, 128>}, {pipeline_mode = #tpu.pipeline_mode<synchronous>, transform_indices = @transform_9, window_bounds = array<i64: 1, 128>}, {pipeline_mode = #tpu.pipeline_mode<synchronous>, transform_indices = @transform_10, window_bounds = array<i64: 1, 128>}, {pipeline_mode = #tpu.pipeline_mode<synchronous>, transform_indices = @transform_11, window_bounds = array<i64: 1, 128>}, {pipeline_mode = #tpu.pipeline_mode<synchronous>, transform_indices = @transform_12, window_bounds = array<i64: 128, 128>}, {pipeline_mode = #tpu.pipeline_mode<synchronous>, transform_indices = @transform_13, window_bounds = array<i64: 64, 128>}, {pipeline_mode = #tpu.pipeline_mode<synchronous>, transform_indices = @transform_14, window_bounds = array<i64: 1, 128>}, {transform_indices = @transform_15, window_bounds = array<i64: 1, 16, 128>}]} {
    %0 = tpu.iota {dimensions = array<i32: 0>} : vector<16x16xi32>
    %1 = tpu.iota {dimensions = array<i32: 1>} : vector<16x16xi32>
    %c1_i32 = arith.constant 1 : i32
    %2 = vector.broadcast %c1_i32 : i32 to vector<16x16xi32>
    %3 = arith.subi %0, %2 : vector<16x16xi32>
    %4 = arith.cmpi eq, %1, %3 : vector<16x16xi32>
    %5 = arith.extui %4 : vector<16x16xi1> to vector<16x16xi32>
    %6 = arith.sitofp %5 : vector<16x16xi32> to vector<16x16xf32>
    %c1_i32_0 = arith.constant 1 : i32
    %7 = vector.broadcast %c1_i32_0 : i32 to vector<16x16xi32>
    %8 = arith.addi %0, %7 : vector<16x16xi32>
    %9 = arith.cmpi eq, %1, %8 : vector<16x16xi32>
    %10 = arith.extui %9 : vector<16x16xi1> to vector<16x16xi32>
    %11 = arith.sitofp %10 : vector<16x16xi32> to vector<16x16xf32>
    %12 = arith.index_cast %arg0 : i32 to index
    %c0 = arith.constant 0 : index
    %13 = vector.load %arg1[%12, %c0] : memref<2x32xf32, #tpu.memory_space<vmem>>, vector<1x32xf32>
    %14 = arith.negf %13 : vector<1x32xf32>
    %15 = math.exp %14 : vector<1x32xf32>
    %cst = arith.constant 1.000000e+00 : f32
    %16 = vector.broadcast %cst : f32 to vector<1x32xf32>
    %17 = arith.addf %16, %15 : vector<1x32xf32>
    %18 = arith.divf %16, %17 : vector<1x32xf32>
    %19 = arith.mulf %13, %18 : vector<1x32xf32>
    %c0_1 = arith.constant 0 : index
    %c0_2 = arith.constant 0 : index
    %20 = vector.load %arg2[%c0_1, %c0_2] : memref<32x64xf32, #tpu.memory_space<vmem>>, vector<32x64xf32>
    %cst_3 = arith.constant dense<0.000000e+00> : vector<1x64xf32>
    %21 = tpu.matmul %19, %20, %cst_3 {dimension_numbers = #tpu.dot_dimension_numbers<[1], [0], [0], [1], [0, 0, 1, 1], [], []>} : vector<1x32xf32>, vector<32x64xf32>, vector<1x64xf32> -> vector<1x64xf32>
    %c0_4 = arith.constant 0 : index
    %c0_5 = arith.constant 0 : index
    %22 = vector.load %arg3[%c0_4, %c0_5] : memref<1x64xf32, #tpu.memory_space<vmem>>, vector<1x64xf32>
    %23 = arith.addf %21, %22 : vector<1x64xf32>
    %c0_6 = arith.constant 0 : index
    %c0_7 = arith.constant 0 : index
    %c0_8 = arith.constant 0 : index
    %24 = vector.load %arg4[%c0_6, %c0_7, %c0_8] : memref<1x16x64xf32, #tpu.memory_space<vmem>>, vector<1x16x64xf32>
    %25 = vector.shape_cast %24 : vector<1x16x64xf32> to vector<16x64xf32>
    %26 = vector.broadcast %23 : vector<1x64xf32> to vector<16x64xf32>
    %27 = arith.addf %25, %26 : vector<16x64xf32>
    %28 = arith.truncf %27 : vector<16x64xf32> to vector<16x64xbf16>
    %c0_9 = arith.constant 0 : index
    %c0_10 = arith.constant 0 : index
    %c0_11 = arith.constant 0 : index
    %29 = vector.load %arg5[%c0_9, %c0_10, %c0_11] : memref<3x64x128xbf16, #tpu.memory_space<vmem>>, vector<1x64x128xbf16>
    %30 = vector.shape_cast %29 : vector<1x64x128xbf16> to vector<64x128xbf16>
    %cst_12 = arith.constant dense<0.000000e+00> : vector<16x128xf32>
    %31 = tpu.matmul %28, %30, %cst_12 {dimension_numbers = #tpu.dot_dimension_numbers<[1], [0], [0], [1], [0, 0, 1, 1], [], []>} : vector<16x64xbf16>, vector<64x128xbf16>, vector<16x128xf32> -> vector<16x128xf32>
    %c1 = arith.constant 1 : index
    %c0_13 = arith.constant 0 : index
    %c0_14 = arith.constant 0 : index
    %32 = vector.load %arg5[%c1, %c0_13, %c0_14] : memref<3x64x128xbf16, #tpu.memory_space<vmem>>, vector<1x64x128xbf16>
    %33 = vector.shape_cast %32 : vector<1x64x128xbf16> to vector<64x128xbf16>
    %cst_15 = arith.constant dense<0.000000e+00> : vector<16x128xf32>
    %34 = tpu.matmul %28, %33, %cst_15 {dimension_numbers = #tpu.dot_dimension_numbers<[1], [0], [0], [1], [0, 0, 1, 1], [], []>} : vector<16x64xbf16>, vector<64x128xbf16>, vector<16x128xf32> -> vector<16x128xf32>
    %c2 = arith.constant 2 : index
    %c0_16 = arith.constant 0 : index
    %c0_17 = arith.constant 0 : index
    %35 = vector.load %arg5[%c2, %c0_16, %c0_17] : memref<3x64x128xbf16, #tpu.memory_space<vmem>>, vector<1x64x128xbf16>
    %36 = vector.shape_cast %35 : vector<1x64x128xbf16> to vector<64x128xbf16>
    %cst_18 = arith.constant dense<0.000000e+00> : vector<16x128xf32>
    %37 = tpu.matmul %28, %36, %cst_18 {dimension_numbers = #tpu.dot_dimension_numbers<[1], [0], [0], [1], [0, 0, 1, 1], [], []>} : vector<16x64xbf16>, vector<64x128xbf16>, vector<16x128xf32> -> vector<16x128xf32>
    %cst_19 = arith.constant dense<0.000000e+00> : vector<16x128xf32>
    %38 = tpu.matmul %6, %31, %cst_19 {dimension_numbers = #tpu.dot_dimension_numbers<[1], [0], [0], [1], [0, 0, 1, 1], [], []>} : vector<16x16xf32>, vector<16x128xf32>, vector<16x128xf32> -> vector<16x128xf32>
    %39 = arith.addf %38, %34 : vector<16x128xf32>
    %cst_20 = arith.constant dense<0.000000e+00> : vector<16x128xf32>
    %40 = tpu.matmul %11, %37, %cst_20 {dimension_numbers = #tpu.dot_dimension_numbers<[1], [0], [0], [1], [0, 0, 1, 1], [], []>} : vector<16x16xf32>, vector<16x128xf32>, vector<16x128xf32> -> vector<16x128xf32>
    %41 = arith.addf %39, %40 : vector<16x128xf32>
    %c0_21 = arith.constant 0 : index
    %c0_22 = arith.constant 0 : index
    %42 = vector.load %arg6[%c0_21, %c0_22] : memref<1x128xf32, #tpu.memory_space<vmem>>, vector<1x128xf32>
    %43 = vector.broadcast %42 : vector<1x128xf32> to vector<16x128xf32>
    %44 = arith.addf %41, %43 : vector<16x128xf32>
    %cst_23 = arith.constant dense<0.000000e+00> : vector<128xf32>
    %45 = vector.multi_reduction <add>, %44, %cst_23 [0] : vector<16x128xf32> to vector<128xf32>
    %46 = vector.shape_cast %45 : vector<128xf32> to vector<1x128xf32>
    %c0_24 = arith.constant 0 : index
    %c0_25 = arith.constant 0 : index
    %47 = vector.load %arg13[%c0_24, %c0_25] : memref<128x128xf32, #tpu.memory_space<vmem>>, vector<128x128xf32>
    %cst_26 = arith.constant dense<0.000000e+00> : vector<1x128xf32>
    %48 = tpu.matmul %46, %47, %cst_26 {dimension_numbers = #tpu.dot_dimension_numbers<[1], [0], [0], [1], [0, 0, 1, 1], [], []>} : vector<1x128xf32>, vector<128x128xf32>, vector<1x128xf32> -> vector<1x128xf32>
    %cst_27 = arith.constant 0.001953125 : f32
    %49 = vector.broadcast %cst_27 : f32 to vector<1x128xf32>
    %50 = arith.mulf %48, %49 : vector<1x128xf32>
    %51 = vector.broadcast %50 : vector<1x128xf32> to vector<16x128xf32>
    %52 = arith.subf %44, %51 : vector<16x128xf32>
    %53 = arith.mulf %52, %52 : vector<16x128xf32>
    %cst_28 = arith.constant dense<0.000000e+00> : vector<128xf32>
    %54 = vector.multi_reduction <add>, %53, %cst_28 [0] : vector<16x128xf32> to vector<128xf32>
    %55 = vector.shape_cast %54 : vector<128xf32> to vector<1x128xf32>
    %c0_29 = arith.constant 0 : index
    %c0_30 = arith.constant 0 : index
    %56 = vector.load %arg13[%c0_29, %c0_30] : memref<128x128xf32, #tpu.memory_space<vmem>>, vector<128x128xf32>
    %cst_31 = arith.constant dense<0.000000e+00> : vector<1x128xf32>
    %57 = tpu.matmul %55, %56, %cst_31 {dimension_numbers = #tpu.dot_dimension_numbers<[1], [0], [0], [1], [0, 0, 1, 1], [], []>} : vector<1x128xf32>, vector<128x128xf32>, vector<1x128xf32> -> vector<1x128xf32>
    %cst_32 = arith.constant 0.001953125 : f32
    %58 = vector.broadcast %cst_32 : f32 to vector<1x128xf32>
    %59 = arith.mulf %57, %58 : vector<1x128xf32>
    %cst_33 = arith.constant 9.99999974E-6 : f32
    %60 = vector.broadcast %cst_33 : f32 to vector<1x128xf32>
    %61 = arith.addf %59, %60 : vector<1x128xf32>
    %62 = math.rsqrt %61 : vector<1x128xf32>
    %63 = vector.broadcast %62 : vector<1x128xf32> to vector<16x128xf32>
    %64 = arith.mulf %52, %63 : vector<16x128xf32>
    %c0_34 = arith.constant 0 : index
    %c0_35 = arith.constant 0 : index
    %65 = vector.load %arg7[%c0_34, %c0_35] : memref<1x128xf32, #tpu.memory_space<vmem>>, vector<1x128xf32>
    %66 = vector.broadcast %65 : vector<1x128xf32> to vector<16x128xf32>
    %67 = arith.mulf %64, %66 : vector<16x128xf32>
    %c0_36 = arith.constant 0 : index
    %c0_37 = arith.constant 0 : index
    %68 = vector.load %arg8[%c0_36, %c0_37] : memref<1x128xf32, #tpu.memory_space<vmem>>, vector<1x128xf32>
    %69 = vector.broadcast %68 : vector<1x128xf32> to vector<16x128xf32>
    %70 = arith.addf %67, %69 : vector<16x128xf32>
    %71 = arith.negf %70 : vector<16x128xf32>
    %72 = math.exp %71 : vector<16x128xf32>
    %cst_38 = arith.constant 1.000000e+00 : f32
    %73 = vector.broadcast %cst_38 : f32 to vector<16x128xf32>
    %74 = arith.addf %73, %72 : vector<16x128xf32>
    %75 = arith.divf %73, %74 : vector<16x128xf32>
    %76 = arith.mulf %70, %75 : vector<16x128xf32>
    %77 = arith.truncf %76 : vector<16x128xf32> to vector<16x128xbf16>
    %c0_39 = arith.constant 0 : index
    %c0_40 = arith.constant 0 : index
    %c0_41 = arith.constant 0 : index
    %78 = vector.load %arg9[%c0_39, %c0_40, %c0_41] : memref<3x128x128xbf16, #tpu.memory_space<vmem>>, vector<1x128x128xbf16>
    %79 = vector.shape_cast %78 : vector<1x128x128xbf16> to vector<128x128xbf16>
    %cst_42 = arith.constant dense<0.000000e+00> : vector<16x128xf32>
    %80 = tpu.matmul %77, %79, %cst_42 {dimension_numbers = #tpu.dot_dimension_numbers<[1], [0], [0], [1], [0, 0, 1, 1], [], []>} : vector<16x128xbf16>, vector<128x128xbf16>, vector<16x128xf32> -> vector<16x128xf32>
    %c1_43 = arith.constant 1 : index
    %c0_44 = arith.constant 0 : index
    %c0_45 = arith.constant 0 : index
    %81 = vector.load %arg9[%c1_43, %c0_44, %c0_45] : memref<3x128x128xbf16, #tpu.memory_space<vmem>>, vector<1x128x128xbf16>
    %82 = vector.shape_cast %81 : vector<1x128x128xbf16> to vector<128x128xbf16>
    %cst_46 = arith.constant dense<0.000000e+00> : vector<16x128xf32>
    %83 = tpu.matmul %77, %82, %cst_46 {dimension_numbers = #tpu.dot_dimension_numbers<[1], [0], [0], [1], [0, 0, 1, 1], [], []>} : vector<16x128xbf16>, vector<128x128xbf16>, vector<16x128xf32> -> vector<16x128xf32>
    %c2_47 = arith.constant 2 : index
    %c0_48 = arith.constant 0 : index
    %c0_49 = arith.constant 0 : index
    %84 = vector.load %arg9[%c2_47, %c0_48, %c0_49] : memref<3x128x128xbf16, #tpu.memory_space<vmem>>, vector<1x128x128xbf16>
    %85 = vector.shape_cast %84 : vector<1x128x128xbf16> to vector<128x128xbf16>
    %cst_50 = arith.constant dense<0.000000e+00> : vector<16x128xf32>
    %86 = tpu.matmul %77, %85, %cst_50 {dimension_numbers = #tpu.dot_dimension_numbers<[1], [0], [0], [1], [0, 0, 1, 1], [], []>} : vector<16x128xbf16>, vector<128x128xbf16>, vector<16x128xf32> -> vector<16x128xf32>
    %cst_51 = arith.constant dense<0.000000e+00> : vector<16x128xf32>
    %87 = tpu.matmul %6, %80, %cst_51 {dimension_numbers = #tpu.dot_dimension_numbers<[1], [0], [0], [1], [0, 0, 1, 1], [], []>} : vector<16x16xf32>, vector<16x128xf32>, vector<16x128xf32> -> vector<16x128xf32>
    %88 = arith.addf %87, %83 : vector<16x128xf32>
    %cst_52 = arith.constant dense<0.000000e+00> : vector<16x128xf32>
    %89 = tpu.matmul %11, %86, %cst_52 {dimension_numbers = #tpu.dot_dimension_numbers<[1], [0], [0], [1], [0, 0, 1, 1], [], []>} : vector<16x16xf32>, vector<16x128xf32>, vector<16x128xf32> -> vector<16x128xf32>
    %90 = arith.addf %88, %89 : vector<16x128xf32>
    %c0_53 = arith.constant 0 : index
    %c0_54 = arith.constant 0 : index
    %91 = vector.load %arg10[%c0_53, %c0_54] : memref<1x128xf32, #tpu.memory_space<vmem>>, vector<1x128xf32>
    %92 = vector.broadcast %91 : vector<1x128xf32> to vector<16x128xf32>
    %93 = arith.addf %90, %92 : vector<16x128xf32>
    %cst_55 = arith.constant dense<0.000000e+00> : vector<128xf32>
    %94 = vector.multi_reduction <add>, %93, %cst_55 [0] : vector<16x128xf32> to vector<128xf32>
    %95 = vector.shape_cast %94 : vector<128xf32> to vector<1x128xf32>
    %c0_56 = arith.constant 0 : index
    %c0_57 = arith.constant 0 : index
    %96 = vector.load %arg13[%c0_56, %c0_57] : memref<128x128xf32, #tpu.memory_space<vmem>>, vector<128x128xf32>
    %cst_58 = arith.constant dense<0.000000e+00> : vector<1x128xf32>
    %97 = tpu.matmul %95, %96, %cst_58 {dimension_numbers = #tpu.dot_dimension_numbers<[1], [0], [0], [1], [0, 0, 1, 1], [], []>} : vector<1x128xf32>, vector<128x128xf32>, vector<1x128xf32> -> vector<1x128xf32>
    %cst_59 = arith.constant 0.001953125 : f32
    %98 = vector.broadcast %cst_59 : f32 to vector<1x128xf32>
    %99 = arith.mulf %97, %98 : vector<1x128xf32>
    %100 = vector.broadcast %99 : vector<1x128xf32> to vector<16x128xf32>
    %101 = arith.subf %93, %100 : vector<16x128xf32>
    %102 = arith.mulf %101, %101 : vector<16x128xf32>
    %cst_60 = arith.constant dense<0.000000e+00> : vector<128xf32>
    %103 = vector.multi_reduction <add>, %102, %cst_60 [0] : vector<16x128xf32> to vector<128xf32>
    %104 = vector.shape_cast %103 : vector<128xf32> to vector<1x128xf32>
    %c0_61 = arith.constant 0 : index
    %c0_62 = arith.constant 0 : index
    %105 = vector.load %arg13[%c0_61, %c0_62] : memref<128x128xf32, #tpu.memory_space<vmem>>, vector<128x128xf32>
    %cst_63 = arith.constant dense<0.000000e+00> : vector<1x128xf32>
    %106 = tpu.matmul %104, %105, %cst_63 {dimension_numbers = #tpu.dot_dimension_numbers<[1], [0], [0], [1], [0, 0, 1, 1], [], []>} : vector<1x128xf32>, vector<128x128xf32>, vector<1x128xf32> -> vector<1x128xf32>
    %cst_64 = arith.constant 0.001953125 : f32
    %107 = vector.broadcast %cst_64 : f32 to vector<1x128xf32>
    %108 = arith.mulf %106, %107 : vector<1x128xf32>
    %cst_65 = arith.constant 9.99999974E-6 : f32
    %109 = vector.broadcast %cst_65 : f32 to vector<1x128xf32>
    %110 = arith.addf %108, %109 : vector<1x128xf32>
    %111 = math.rsqrt %110 : vector<1x128xf32>
    %112 = vector.broadcast %111 : vector<1x128xf32> to vector<16x128xf32>
    %113 = arith.mulf %101, %112 : vector<16x128xf32>
    %c0_66 = arith.constant 0 : index
    %c0_67 = arith.constant 0 : index
    %114 = vector.load %arg11[%c0_66, %c0_67] : memref<1x128xf32, #tpu.memory_space<vmem>>, vector<1x128xf32>
    %115 = vector.broadcast %114 : vector<1x128xf32> to vector<16x128xf32>
    %116 = arith.mulf %113, %115 : vector<16x128xf32>
    %c0_68 = arith.constant 0 : index
    %c0_69 = arith.constant 0 : index
    %117 = vector.load %arg12[%c0_68, %c0_69] : memref<1x128xf32, #tpu.memory_space<vmem>>, vector<1x128xf32>
    %118 = vector.broadcast %117 : vector<1x128xf32> to vector<16x128xf32>
    %119 = arith.addf %116, %118 : vector<16x128xf32>
    %120 = arith.negf %119 : vector<16x128xf32>
    %121 = math.exp %120 : vector<16x128xf32>
    %cst_70 = arith.constant 1.000000e+00 : f32
    %122 = vector.broadcast %cst_70 : f32 to vector<16x128xf32>
    %123 = arith.addf %122, %121 : vector<16x128xf32>
    %124 = arith.divf %122, %123 : vector<16x128xf32>
    %125 = arith.mulf %119, %124 : vector<16x128xf32>
    %126 = arith.truncf %25 : vector<16x64xf32> to vector<16x64xbf16>
    %c0_71 = arith.constant 0 : index
    %c0_72 = arith.constant 0 : index
    %127 = vector.load %arg14[%c0_71, %c0_72] : memref<64x128xbf16, #tpu.memory_space<vmem>>, vector<64x128xbf16>
    %cst_73 = arith.constant dense<0.000000e+00> : vector<16x128xf32>
    %128 = tpu.matmul %126, %127, %cst_73 {dimension_numbers = #tpu.dot_dimension_numbers<[1], [0], [0], [1], [0, 0, 1, 1], [], []>} : vector<16x64xbf16>, vector<64x128xbf16>, vector<16x128xf32> -> vector<16x128xf32>
    %c0_74 = arith.constant 0 : index
    %c0_75 = arith.constant 0 : index
    %129 = vector.load %arg15[%c0_74, %c0_75] : memref<1x128xf32, #tpu.memory_space<vmem>>, vector<1x128xf32>
    %130 = vector.broadcast %129 : vector<1x128xf32> to vector<16x128xf32>
    %131 = arith.addf %128, %130 : vector<16x128xf32>
    %132 = arith.addf %125, %131 : vector<16x128xf32>
    %c0_76 = arith.constant 0 : index
    %c0_77 = arith.constant 0 : index
    %c0_78 = arith.constant 0 : index
    %133 = vector.load %arg16[%c0_76, %c0_77, %c0_78] : memref<1x16x128xf32, #tpu.memory_space<vmem>>, vector<1x16x128xf32>
    %134 = vector.shape_cast %133 : vector<1x16x128xf32> to vector<16x128xf32>
    %135 = vector.shape_cast %132 : vector<16x128xf32> to vector<1x16x128xf32>
    tpu.vector_store %arg16[%c0_76, %c0_77, %c0_78], %135 {strides = array<i32>} : memref<1x16x128xf32, #tpu.memory_space<vmem>>, vector<1x16x128xf32>,
    return
  }
  func.func @transform_0(%arg0: i32) -> (i32, i32) {
    %c0_i32 = arith.constant 0 : i32
    %c0_i32_0 = arith.constant 0 : i32
    %c0_i32_1 = arith.constant 0 : i32
    return %c0_i32, %c0_i32_0 : i32, i32
  }
  func.func @transform_1(%arg0: i32) -> (i32, i32) {
    %c0_i32 = arith.constant 0 : i32
    %c0_i32_0 = arith.constant 0 : i32
    %c0_i32_1 = arith.constant 0 : i32
    return %c0_i32, %c0_i32_0 : i32, i32
  }
  func.func @transform_2(%arg0: i32) -> (i32, i32) {
    %c0_i32 = arith.constant 0 : i32
    %c0_i32_0 = arith.constant 0 : i32
    %c0_i32_1 = arith.constant 0 : i32
    return %c0_i32, %c0_i32_0 : i32, i32
  }
  func.func @transform_3(%arg0: i32) -> (i32, i32, i32) {
    %c0_i32 = arith.constant 0 : i32
    %c0_i32_0 = arith.constant 0 : i32
    %c0_i32_1 = arith.constant 0 : i32
    return %arg0, %c0_i32, %c0_i32_0 : i32, i32, i32
  }
  func.func @transform_4(%arg0: i32) -> (i32, i32, i32) {
    %c0_i32 = arith.constant 0 : i32
    %c0_i32_0 = arith.constant 0 : i32
    %c0_i32_1 = arith.constant 0 : i32
    %c0_i32_2 = arith.constant 0 : i32
    return %c0_i32, %c0_i32_0, %c0_i32_1 : i32, i32, i32
  }
  func.func @transform_5(%arg0: i32) -> (i32, i32) {
    %c0_i32 = arith.constant 0 : i32
    %c0_i32_0 = arith.constant 0 : i32
    %c0_i32_1 = arith.constant 0 : i32
    return %c0_i32, %c0_i32_0 : i32, i32
  }
  func.func @transform_6(%arg0: i32) -> (i32, i32) {
    %c0_i32 = arith.constant 0 : i32
    %c0_i32_0 = arith.constant 0 : i32
    %c0_i32_1 = arith.constant 0 : i32
    return %c0_i32, %c0_i32_0 : i32, i32
  }
  func.func @transform_7(%arg0: i32) -> (i32, i32) {
    %c0_i32 = arith.constant 0 : i32
    %c0_i32_0 = arith.constant 0 : i32
    %c0_i32_1 = arith.constant 0 : i32
    return %c0_i32, %c0_i32_0 : i32, i32
  }
  func.func @transform_8(%arg0: i32) -> (i32, i32, i32) {
    %c0_i32 = arith.constant 0 : i32
    %c0_i32_0 = arith.constant 0 : i32
    %c0_i32_1 = arith.constant 0 : i32
    %c0_i32_2 = arith.constant 0 : i32
    return %c0_i32, %c0_i32_0, %c0_i32_1 : i32, i32, i32
  }
  func.func @transform_9(%arg0: i32) -> (i32, i32) {
    %c0_i32 = arith.constant 0 : i32
    %c0_i32_0 = arith.constant 0 : i32
    %c0_i32_1 = arith.constant 0 : i32
    return %c0_i32, %c0_i32_0 : i32, i32
  }
  func.func @transform_10(%arg0: i32) -> (i32, i32) {
    %c0_i32 = arith.constant 0 : i32
    %c0_i32_0 = arith.constant 0 : i32
    %c0_i32_1 = arith.constant 0 : i32
    return %c0_i32, %c0_i32_0 : i32, i32
  }
  func.func @transform_11(%arg0: i32) -> (i32, i32) {
    %c0_i32 = arith.constant 0 : i32
    %c0_i32_0 = arith.constant 0 : i32
    %c0_i32_1 = arith.constant 0 : i32
    return %c0_i32, %c0_i32_0 : i32, i32
  }
  func.func @transform_12(%arg0: i32) -> (i32, i32) {
    %c0_i32 = arith.constant 0 : i32
    %c0_i32_0 = arith.constant 0 : i32
    %c0_i32_1 = arith.constant 0 : i32
    return %c0_i32, %c0_i32_0 : i32, i32
  }
  func.func @transform_13(%arg0: i32) -> (i32, i32) {
    %c0_i32 = arith.constant 0 : i32
    %c0_i32_0 = arith.constant 0 : i32
    %c0_i32_1 = arith.constant 0 : i32
    return %c0_i32, %c0_i32_0 : i32, i32
  }
  func.func @transform_14(%arg0: i32) -> (i32, i32) {
    %c0_i32 = arith.constant 0 : i32
    %c0_i32_0 = arith.constant 0 : i32
    %c0_i32_1 = arith.constant 0 : i32
    return %c0_i32, %c0_i32_0 : i32, i32
  }
  func.func @transform_15(%arg0: i32) -> (i32, i32, i32) {
    %c0_i32 = arith.constant 0 : i32
    %c0_i32_0 = arith.constant 0 : i32
    %c0_i32_1 = arith.constant 0 : i32
    return %arg0, %c0_i32, %c0_i32_0 : i32, i32, i32
  }
}

</mosaic_0001>

<llo_original>
// kernel: resnet_block_forward.1
$region0: #{resnet_block_forward.1}
  #allocation0 [shape = 'u32[]', space=smem, size = 0x4, offset = 0x4, fixed_abs, tag = 'smem constant byte address 0x4 - core index']
  #allocation1 [shape = 'u32[144,128]{1,0:T(1,128)}', space=vmem, size = 0x12000, scoped, tag = 'internal scratch']
  %s0 = inlined_call_operand.vmem [shape: f32[2,32], index: 0, kind: input, shape index: {}]
  %s1 = inlined_call_operand.vmem [shape: f32[32,64], index: 1, kind: input, shape index: {}]
  %s2 = inlined_call_operand.hbm [shape: f32[1,64], index: 2, kind: input, shape index: {}]
  %s3 = inlined_call_operand.vmem [shape: f32[2,16,64], index: 3, kind: input, shape index: {}]
  %s4 = inlined_call_operand.vmem [shape: bf16[3,64,128], index: 4, kind: input, shape index: {}]
  %s5 = inlined_call_operand.hbm [shape: f32[1,128], index: 5, kind: input, shape index: {}]
  %s6 = inlined_call_operand.hbm [shape: f32[1,128], index: 6, kind: input, shape index: {}]
  %s7 = inlined_call_operand.hbm [shape: f32[1,128], index: 7, kind: input, shape index: {}]
  %s8 = inlined_call_operand.vmem [shape: bf16[3,128,128], index: 8, kind: input, shape index: {}]
  %s9 = inlined_call_operand.hbm [shape: f32[1,128], index: 9, kind: input, shape index: {}]
  %s10 = inlined_call_operand.vmem [shape: f32[1,128], index: 10, kind: input, shape index: {}]
  %s11 = inlined_call_operand.hbm [shape: f32[1,128], index: 11, kind: input, shape index: {}]
  %s12 = inlined_call_operand.vmem [shape: f32[128,128], index: 12, kind: input, shape index: {}]
  %s13 = inlined_call_operand.hbm [shape: bf16[64,128], index: 13, kind: input, shape index: {}]
  %s14 = inlined_call_operand.hbm [shape: f32[1,128], index: 14, kind: input, shape index: {}]
  %s15 = inlined_call_operand.vmem [shape: f32[2,16,128], index: 15, kind: output, shape index: {}]
  %s16 = sld [smem:[#allocation0]]
  $region125: #{resnet_block_forward.1} parent=0
    _
  %s18 = ssub.s32 1, %s16
  %s19 = scalar_select 0, %s18, %s16
  $region1: #{resnet_block_forward.1} parent=0
    #allocation2 [shape = 'u8[512]{0}', space=vmem, size = 0x400, scoped, tag = 'input window, operand 2, single buffered']
    #allocation3 [shape = 's32[2]{0}', space=sflag, size = 0x8, scoped, tag = 'scoped memory for resnet_block_forward.1']
    #allocation4 [shape = 'u8[512]{0}', space=vmem, size = 0x400, scoped, tag = 'input window, operand 5, single buffered']
    #allocation5 [shape = 's32[1]{0}', space=sflag, size = 0x4, scoped, tag = 'scoped memory for resnet_block_forward.1']
    #allocation6 [shape = 'u8[512]{0}', space=vmem, size = 0x400, scoped, tag = 'input window, operand 6, single buffered']
    #allocation7 [shape = 'u8[512]{0}', space=vmem, size = 0x400, scoped, tag = 'input window, operand 7, single buffered']
    #allocation8 [shape = 's32[1]{0}', space=sflag, size = 0x4, scoped, tag = 'scoped memory for resnet_block_forward.1']
    #allocation9 [shape = 'u8[512]{0}', space=vmem, size = 0x400, scoped, tag = 'input window, operand 9, single buffered']
    #allocation10 [shape = 'u8[512]{0}', space=vmem, size = 0x400, scoped, tag = 'input window, operand 11, single buffered']
    #allocation11 [shape = 's32[1]{0}', space=sflag, size = 0x4, scoped, tag = 'scoped memory for resnet_block_forward.1']
    #allocation12 [shape = 'u8[16384]{0}', space=vmem, size = 0x4000, scoped, tag = 'input window, operand 13, single buffered']
    #allocation13 [shape = 'u8[512]{0}', space=vmem, size = 0x400, scoped, tag = 'input window, operand 14, single buffered']
    #allocation14 [shape = 's32[1]{0}', space=sflag, size = 0x4, scoped, tag = 'scoped memory for resnet_block_forward.1']
    %20 = vsyncpa [#allocation3], 0
    %21 = vsyncpa [#allocation5], 0
    %22 = vsyncpa [#allocation8], 0
    %23 = vsyncpa [#allocation11], 0
    %24 = vsyncpa [#allocation14], 0
    loop: start=0, step=1, limit=4
    $region2: #{resnet_block_forward.1} parent=1 // loop_pre_header
      _
    $region3: #{resnet_block_forward.1} parent=1 // loop_header
      %s26 = sphi 0, %s30
      %p27 = scmp.ge.s32.totalorder %s26, 4
      %s34 = sphi 0, %s34
      %s36 = sphi 0, %s34
      %s37 = sphi 0, %s36
      %s51 = sphi 0, %s37
      %s55 = sphi 0, %s55
      %s57 = sphi 0, %s55
      %s58 = sphi 0, %s57
      %s72 = sphi 0, %s58
      %s76 = sphi 0, %s76
      %s78 = sphi 0, %s76
      %s79 = sphi 0, %s78
      %s93 = sphi 0, %s79
      %s99 = sphi 0, %s101
      %s102 = sphi 0, %s99
      %s103 = sphi 0, %s102
      %s119 = sphi 0, %s103
      %s123 = sphi 0, %s123
      %s125 = sphi 0, %s123
      %s126 = sphi 0, %s125
      %s140 = sphi 0, %s126
      %s144 = sphi 0, %s144
      %s146 = sphi 0, %s144
      %s147 = sphi 0, %s146
      %s161 = sphi 0, %s147
      %s165 = sphi 0, %s165
      %s167 = sphi 0, %s165
      %s168 = sphi 0, %s167
      %s182 = sphi 0, %s168
      %s186 = sphi 0, %s186
      %s188 = sphi 0, %s186
      %s189 = sphi 0, %s188
      %s203 = sphi 0, %s189
      %s207 = sphi 0, %s207
      %s209 = sphi 0, %s207
      %s210 = sphi 0, %s209
      %s224 = sphi 0, %s210
      %s228 = sphi 0, %s228
      %s230 = sphi 0, %s228
      %s231 = sphi 0, %s230
      %s245 = sphi 0, %s231
      %s249 = sphi 0, %s249
      %s251 = sphi 0, %s249
      %s252 = sphi 0, %s251
      %s266 = sphi 0, %s252
      %s270 = sphi 0, %s270
      %s272 = sphi 0, %s270
      %s273 = sphi 0, %s272
      %s287 = sphi 0, %s273
      %s291 = sphi 0, %s291
      %s293 = sphi 0, %s291
      %s294 = sphi 0, %s293
      %s308 = sphi 0, %s294
      %s312 = sphi 0, %s312
      %s314 = sphi 0, %s312
      %s315 = sphi 0, %s314
      %s329 = sphi 0, %s315
      %s333 = sphi 0, %s333
      %s335 = sphi 0, %s333
      %s336 = sphi 0, %s335
      %s350 = sphi 0, %s336
      %s356 = sphi 0, %s358
      %s359 = sphi 0, %s356
      %s360 = sphi 0, %s359
      %s376 = sphi 0, %s360
    $region4: #{resnet_block_forward.1} parent=1 // loop_header_branch
      %29 = sbr.rel (%p27) target = $region8
    $region5: #{resnet_block_forward.1} parent=1 // loop_body
      %s31 = ssub.s32 %s26, 1
      %s32 = ssub.s32 %s26, 2
      %s33 = sadd.s32 %s26, 1
      %s35 = sadd.s32 %s34, 1
      %p38 = scmp.eq.s32.totalorder %s26, 1
      %p39 = scmp.ne.s32.totalorder %s34, %s36
      %p40 = scmp.eq.s32.totalorder %s26, 0
      %p41 = por %p39, %p40
      %p42 = scmp.ne.s32.totalorder %s34, %s36
      %p43 = scmp.eq.s32.totalorder %s31, 1
      %p44 = por %p42, %p43
      %p45 = scmp.ne.s32.totalorder %s36, %s37
      %p46 = scmp.eq.s32.totalorder %s31, 0
      %p47 = por %p45, %p46
      %p48 = scmp.ne.s32.totalorder %s36, %s37
      %p49 = scmp.eq.s32.totalorder %s32, 1
      %p50 = por %p48, %p49
      %p52 = scmp.ne.s32.totalorder %s37, %s51
      %p53 = scmp.eq.s32.totalorder %s32, 0
      %p54 = por %p52, %p53
      %s56 = sadd.s32 %s55, 1
      %p59 = scmp.eq.s32.totalorder %s26, 1
      %p60 = scmp.ne.s32.totalorder %s55, %s57
      %p61 = scmp.eq.s32.totalorder %s26, 0
      %p62 = por %p60, %p61
      %p63 = scmp.ne.s32.totalorder %s55, %s57
      %p64 = scmp.eq.s32.totalorder %s31, 1
      %p65 = por %p63, %p64
      %p66 = scmp.ne.s32.totalorder %s57, %s58
      %p67 = scmp.eq.s32.totalorder %s31, 0
      %p68 = por %p66, %p67
      %p69 = scmp.ne.s32.totalorder %s57, %s58
      %p70 = scmp.eq.s32.totalorder %s32, 1
      %p71 = por %p69, %p70
      %p73 = scmp.ne.s32.totalorder %s58, %s72
      %p74 = scmp.eq.s32.totalorder %s32, 0
      %p75 = por %p73, %p74
      %s77 = sadd.s32 %s76, 1
      %p80 = scmp.eq.s32.totalorder %s26, 1
      %p81 = scmp.ne.s32.totalorder %s76, %s78
      %p82 = scmp.eq.s32.totalorder %s26, 0
      %p83 = por %p81, %p82
      %p84 = scmp.ne.s32.totalorder %s76, %s78
      %p85 = scmp.eq.s32.totalorder %s31, 1
      %p86 = por %p84, %p85
      %p87 = scmp.ne.s32.totalorder %s78, %s79
      %p88 = scmp.eq.s32.totalorder %s31, 0
      %p89 = por %p87, %p88
      %p90 = scmp.ne.s32.totalorder %s78, %s79
      %p91 = scmp.eq.s32.totalorder %s32, 1
      %p92 = por %p90, %p91
      %p94 = scmp.ne.s32.totalorder %s79, %s93
      %p95 = scmp.eq.s32.totalorder %s32, 0
      %p96 = por %p94, %p95
      %s97 = ssub.s32 %s26, %s33
      %p98 = scmp.eq.s32.totalorder %s97, 0
      %s100 = sadd.s32 %s99, 1
      %s101 = scalar_select %p98, %s99, %s100
      %p104 = pneg %p98
      %p105 = scmp.eq.s32.totalorder %s26, 1
      %p106 = por %p104, %p105
      %p107 = scmp.ne.s32.totalorder %s99, %s102
      %p108 = scmp.eq.s32.totalorder %s26, 0
      %p109 = por %p107, %p108
      %p110 = scmp.ne.s32.totalorder %s99, %s102
      %p111 = scmp.eq.s32.totalorder %s31, 1
      %p112 = por %p110, %p111
      %p113 = scmp.ne.s32.totalorder %s102, %s103
      %p114 = scmp.eq.s32.totalorder %s31, 0
      %p115 = por %p113, %p114
      %p116 = scmp.ne.s32.totalorder %s102, %s103
      %p117 = scmp.eq.s32.totalorder %s32, 1
      %p118 = por %p116, %p117
      %p120 = scmp.ne.s32.totalorder %s103, %s119
      %p121 = scmp.eq.s32.totalorder %s32, 0
      %p122 = por %p120, %p121
      %s124 = sadd.s32 %s123, 1
      %p127 = scmp.eq.s32.totalorder %s26, 1
      %p128 = scmp.ne.s32.totalorder %s123, %s125
      %p129 = scmp.eq.s32.totalorder %s26, 0
      %p130 = por %p128, %p129
      %p131 = scmp.ne.s32.totalorder %s123, %s125
      %p132 = scmp.eq.s32.totalorder %s31, 1
      %p133 = por %p131, %p132
      %p134 = scmp.ne.s32.totalorder %s125, %s126
      %p135 = scmp.eq.s32.totalorder %s31, 0
      %p136 = por %p134, %p135
      %p137 = scmp.ne.s32.totalorder %s125, %s126
      %p138 = scmp.eq.s32.totalorder %s32, 1
      %p139 = por %p137, %p138
      %p141 = scmp.ne.s32.totalorder %s126, %s140
      %p142 = scmp.eq.s32.totalorder %s32, 0
      %p143 = por %p141, %p142
      %s145 = sadd.s32 %s144, 1
      %p148 = scmp.eq.s32.totalorder %s26, 1
      %p149 = scmp.ne.s32.totalorder %s144, %s146
      %p150 = scmp.eq.s32.totalorder %s26, 0
      %p151 = por %p149, %p150
      %p152 = scmp.ne.s32.totalorder %s144, %s146
      %p153 = scmp.eq.s32.totalorder %s31, 1
      %p154 = por %p152, %p153
      %p155 = scmp.ne.s32.totalorder %s146, %s147
      %p156 = scmp.eq.s32.totalorder %s31, 0
      %p157 = por %p155, %p156
      %p158 = scmp.ne.s32.totalorder %s146, %s147
      %p159 = scmp.eq.s32.totalorder %s32, 1
      %p160 = por %p158, %p159
      %p162 = scmp.ne.s32.totalorder %s147, %s161
      %p163 = scmp.eq.s32.totalorder %s32, 0
      %p164 = por %p162, %p163
      %s166 = sadd.s32 %s165, 1
      %p169 = scmp.eq.s32.totalorder %s26, 1
      %p170 = scmp.ne.s32.totalorder %s165, %s167
      %p171 = scmp.eq.s32.totalorder %s26, 0
      %p172 = por %p170, %p171
      %p173 = scmp.ne.s32.totalorder %s165, %s167
      %p174 = scmp.eq.s32.totalorder %s31, 1
      %p175 = por %p173, %p174
      %p176 = scmp.ne.s32.totalorder %s167, %s168
      %p177 = scmp.eq.s32.totalorder %s31, 0
      %p178 = por %p176, %p177
      %p179 = scmp.ne.s32.totalorder %s167, %s168
      %p180 = scmp.eq.s32.totalorder %s32, 1
      %p181 = por %p179, %p180
      %p183 = scmp.ne.s32.totalorder %s168, %s182
      %p184 = scmp.eq.s32.totalorder %s32, 0
      %p185 = por %p183, %p184
      %s187 = sadd.s32 %s186, 1
      %p190 = scmp.eq.s32.totalorder %s26, 1
      %p191 = scmp.ne.s32.totalorder %s186, %s188
      %p192 = scmp.eq.s32.totalorder %s26, 0
      %p193 = por %p191, %p192
      %p194 = scmp.ne.s32.totalorder %s186, %s188
      %p195 = scmp.eq.s32.totalorder %s31, 1
      %p196 = por %p194, %p195
      %p197 = scmp.ne.s32.totalorder %s188, %s189
      %p198 = scmp.eq.s32.totalorder %s31, 0
      %p199 = por %p197, %p198
      %p200 = scmp.ne.s32.totalorder %s188, %s189
      %p201 = scmp.eq.s32.totalorder %s32, 1
      %p202 = por %p200, %p201
      %p204 = scmp.ne.s32.totalorder %s189, %s203
      %p205 = scmp.eq.s32.totalorder %s32, 0
      %p206 = por %p204, %p205
      %s208 = sadd.s32 %s207, 1
      %p211 = scmp.eq.s32.totalorder %s26, 1
      %p212 = scmp.ne.s32.totalorder %s207, %s209
      %p213 = scmp.eq.s32.totalorder %s26, 0
      %p214 = por %p212, %p213
      %p215 = scmp.ne.s32.totalorder %s207, %s209
      %p216 = scmp.eq.s32.totalorder %s31, 1
      %p217 = por %p215, %p216
      %p218 = scmp.ne.s32.totalorder %s209, %s210
      %p219 = scmp.eq.s32.totalorder %s31, 0
      %p220 = por %p218, %p219
      %p221 = scmp.ne.s32.totalorder %s209, %s210
      %p222 = scmp.eq.s32.totalorder %s32, 1
      %p223 = por %p221, %p222
      %p225 = scmp.ne.s32.totalorder %s210, %s224
      %p226 = scmp.eq.s32.totalorder %s32, 0
      %p227 = por %p225, %p226
      %s229 = sadd.s32 %s228, 1
      %p232 = scmp.eq.s32.totalorder %s26, 1
      %p233 = scmp.ne.s32.totalorder %s228, %s230
      %p234 = scmp.eq.s32.totalorder %s26, 0
      %p235 = por %p233, %p234
      %p236 = scmp.ne.s32.totalorder %s228, %s230
      %p237 = scmp.eq.s32.totalorder %s31, 1
      %p238 = por %p236, %p237
      %p239 = scmp.ne.s32.totalorder %s230, %s231
      %p240 = scmp.eq.s32.totalorder %s31, 0
      %p241 = por %p239, %p240
      %p242 = scmp.ne.s32.totalorder %s230, %s231
      %p243 = scmp.eq.s32.totalorder %s32, 1
      %p244 = por %p242, %p243
      %p246 = scmp.ne.s32.totalorder %s231, %s245
      %p247 = scmp.eq.s32.totalorder %s32, 0
      %p248 = por %p246, %p247
      %s250 = sadd.s32 %s249, 1
      %p253 = scmp.eq.s32.totalorder %s26, 1
      %p254 = scmp.ne.s32.totalorder %s249, %s251
      %p255 = scmp.eq.s32.totalorder %s26, 0
      %p256 = por %p254, %p255
      %p257 = scmp.ne.s32.totalorder %s249, %s251
      %p258 = scmp.eq.s32.totalorder %s31, 1
      %p259 = por %p257, %p258
      %p260 = scmp.ne.s32.totalorder %s251, %s252
      %p261 = scmp.eq.s32.totalorder %s31, 0
      %p262 = por %p260, %p261
      %p263 = scmp.ne.s32.totalorder %s251, %s252
      %p264 = scmp.eq.s32.totalorder %s32, 1
      %p265 = por %p263, %p264
      %p267 = scmp.ne.s32.totalorder %s252, %s266
      %p268 = scmp.eq.s32.totalorder %s32, 0
      %p269 = por %p267, %p268
      %s271 = sadd.s32 %s270, 1
      %p274 = scmp.eq.s32.totalorder %s26, 1
      %p275 = scmp.ne.s32.totalorder %s270, %s272
      %p276 = scmp.eq.s32.totalorder %s26, 0
      %p277 = por %p275, %p276
      %p278 = scmp.ne.s32.totalorder %s270, %s272
      %p279 = scmp.eq.s32.totalorder %s31, 1
      %p280 = por %p278, %p279
      %p281 = scmp.ne.s32.totalorder %s272, %s273
      %p282 = scmp.eq.s32.totalorder %s31, 0
      %p283 = por %p281, %p282
      %p284 = scmp.ne.s32.totalorder %s272, %s273
      %p285 = scmp.eq.s32.totalorder %s32, 1
      %p286 = por %p284, %p285
      %p288 = scmp.ne.s32.totalorder %s273, %s287
      %p289 = scmp.eq.s32.totalorder %s32, 0
      %p290 = por %p288, %p289
      %s292 = sadd.s32 %s291, 1
      %p295 = scmp.eq.s32.totalorder %s26, 1
      %p296 = scmp.ne.s32.totalorder %s291, %s293
      %p297 = scmp.eq.s32.totalorder %s26, 0
      %p298 = por %p296, %p297
      %p299 = scmp.ne.s32.totalorder %s291, %s293
      %p300 = scmp.eq.s32.totalorder %s31, 1
      %p301 = por %p299, %p300
      %p302 = scmp.ne.s32.totalorder %s293, %s294
      %p303 = scmp.eq.s32.totalorder %s31, 0
      %p304 = por %p302, %p303
      %p305 = scmp.ne.s32.totalorder %s293, %s294
      %p306 = scmp.eq.s32.totalorder %s32, 1
      %p307 = por %p305, %p306
      %p309 = scmp.ne.s32.totalorder %s294, %s308
      %p310 = scmp.eq.s32.totalorder %s32, 0
      %p311 = por %p309, %p310
      %s313 = sadd.s32 %s312, 1
      %p316 = scmp.eq.s32.totalorder %s26, 1
      %p317 = scmp.ne.s32.totalorder %s312, %s314
      %p318 = scmp.eq.s32.totalorder %s26, 0
      %p319 = por %p317, %p318
      %p320 = scmp.ne.s32.totalorder %s312, %s314
      %p321 = scmp.eq.s32.totalorder %s31, 1
      %p322 = por %p320, %p321
      %p323 = scmp.ne.s32.totalorder %s314, %s315
      %p324 = scmp.eq.s32.totalorder %s31, 0
      %p325 = por %p323, %p324
      %p326 = scmp.ne.s32.totalorder %s314, %s315
      %p327 = scmp.eq.s32.totalorder %s32, 1
      %p328 = por %p326, %p327
      %p330 = scmp.ne.s32.totalorder %s315, %s329
      %p331 = scmp.eq.s32.totalorder %s32, 0
      %p332 = por %p330, %p331
      %s334 = sadd.s32 %s333, 1
      %p337 = scmp.eq.s32.totalorder %s26, 1
      %p338 = scmp.ne.s32.totalorder %s333, %s335
      %p339 = scmp.eq.s32.totalorder %s26, 0
      %p340 = por %p338, %p339
      %p341 = scmp.ne.s32.totalorder %s333, %s335
      %p342 = scmp.eq.s32.totalorder %s31, 1
      %p343 = por %p341, %p342
      %p344 = scmp.ne.s32.totalorder %s335, %s336
      %p345 = scmp.eq.s32.totalorder %s31, 0
      %p346 = por %p344, %p345
      %p347 = scmp.ne.s32.totalorder %s335, %s336
      %p348 = scmp.eq.s32.totalorder %s32, 1
      %p349 = por %p347, %p348
      %p351 = scmp.ne.s32.totalorder %s336, %s350
      %p352 = scmp.eq.s32.totalorder %s32, 0
      %p353 = por %p351, %p352
      %s354 = ssub.s32 %s26, %s33
      %p355 = scmp.eq.s32.totalorder %s354, 0
      %s357 = sadd.s32 %s356, 1
      %s358 = scalar_select %p355, %s356, %s357
      %p361 = pneg %p355
      %p362 = scmp.eq.s32.totalorder %s26, 1
      %p363 = por %p361, %p362
      %p364 = scmp.ne.s32.totalorder %s356, %s359
      %p365 = scmp.eq.s32.totalorder %s26, 0
      %p366 = por %p364, %p365
      %p367 = scmp.ne.s32.totalorder %s356, %s359
      %p368 = scmp.eq.s32.totalorder %s31, 1
      %p369 = por %p367, %p368
      %p370 = scmp.ne.s32.totalorder %s359, %s360
      %p371 = scmp.eq.s32.totalorder %s31, 0
      %p372 = por %p370, %p371
      %p373 = scmp.ne.s32.totalorder %s359, %s360
      %p374 = scmp.eq.s32.totalorder %s32, 1
      %p375 = por %p373, %p374
      %p377 = scmp.ne.s32.totalorder %s360, %s376
      %p378 = scmp.eq.s32.totalorder %s32, 0
      %p379 = por %p377, %p378
      %p380 = scmp.le.s32.totalorder 1, %s26
      %p381 = scmp.lt.s32.totalorder %s26, 3
      %p382 = pnand %p380, %p381
      %p383 = pneg %p382
      // Predicated region
      $region9: #{resnet_block_forward.1} parent=5 // pred_check
        _
      $region10: #{resnet_block_forward.1} parent=5 // pred_check_branch
        %385 = sbr.rel (%p382) target = $region12
      $region11: #{resnet_block_forward.1} parent=5 // pred_region
        %s386 = ssub.s32 %s26, 1
        // Predicated region
        $region13: #{resnet_block_forward.1} parent=11 // pred_check
          %p387 = pneg %p47
        $region14: #{resnet_block_forward.1} parent=11 // pred_check_branch
          %389 = sbr.rel (%p387) target = $region16
        $region15: #{resnet_block_forward.1} parent=11 // pred_region
          _
        $region16: #{resnet_block_forward.1} parent=11 // pred_fallthru
          _
        // Predicated region
        $region17: #{resnet_block_forward.1} parent=11 // pred_check
          %p390 = pneg %p68
        $region18: #{resnet_block_forward.1} parent=11 // pred_check_branch
          %392 = sbr.rel (%p390) target = $region20
        $region19: #{resnet_block_forward.1} parent=11 // pred_region
          _
        $region20: #{resnet_block_forward.1} parent=11 // pred_fallthru
          _
        // Predicated region
        $region21: #{resnet_block_forward.1} parent=11 // pred_check
          %p393 = pneg %p89
        $region22: #{resnet_block_forward.1} parent=11 // pred_check_branch
          %395 = sbr.rel (%p393) target = $region24
        $region23: #{resnet_block_forward.1} parent=11 // pred_region
          %s397 = ssub.s32 16, 16
          %398 = vsyncadd [#allocation3], %s397
          %s400 = sshll.u32 [#allocation2], 4
          %s401 = int_to_ptr.vmem [resolvable:$true] %s400
          %403 = dma.hbm_to_vmem [thread:$0]  %s2, 16, %s401, [#allocation3]
        $region24: #{resnet_block_forward.1} parent=11 // pred_fallthru
          _
        // Predicated region
        $region25: #{resnet_block_forward.1} parent=11 // pred_check
          %p404 = pneg %p136
        $region26: #{resnet_block_forward.1} parent=11 // pred_check_branch
          %406 = sbr.rel (%p404) target = $region28
        $region27: #{resnet_block_forward.1} parent=11 // pred_region
          _
        $region28: #{resnet_block_forward.1} parent=11 // pred_fallthru
          _
        // Predicated region
        $region29: #{resnet_block_forward.1} parent=11 // pred_check
          %p407 = pneg %p157
        $region30: #{resnet_block_forward.1} parent=11 // pred_check_branch
          %409 = sbr.rel (%p407) target = $region32
        $region31: #{resnet_block_forward.1} parent=11 // pred_region
          %s411 = ssub.s32 16, 16
          %412 = vsyncadd [#allocation5], %s411
          %s414 = sshll.u32 [#allocation4], 4
          %s415 = int_to_ptr.vmem [resolvable:$true] %s414
          %417 = dma.hbm_to_vmem [thread:$0]  %s5, 16, %s415, [#allocation5]
        $region32: #{resnet_block_forward.1} parent=11 // pred_fallthru
          _
        // Predicated region
        $region33: #{resnet_block_forward.1} parent=11 // pred_check
          %p418 = pneg %p178
        $region34: #{resnet_block_forward.1} parent=11 // pred_check_branch
          %420 = sbr.rel (%p418) target = $region36
        $region35: #{resnet_block_forward.1} parent=11 // pred_region
          %s422 = ssub.s32 16, 16
          %423 = vsyncadd [#allocation5], %s422
          %s425 = sshll.u32 [#allocation6], 4
          %s426 = int_to_ptr.vmem [resolvable:$true] %s425
          %428 = dma.hbm_to_vmem [thread:$0]  %s6, 16, %s426, [#allocation5]
        $region36: #{resnet_block_forward.1} parent=11 // pred_fallthru
          _
        // Predicated region
        $region37: #{resnet_block_forward.1} parent=11 // pred_check
          %p429 = pneg %p199
        $region38: #{resnet_block_forward.1} parent=11 // pred_check_branch
          %431 = sbr.rel (%p429) target = $region40
        $region39: #{resnet_block_forward.1} parent=11 // pred_region
          %s433 = ssub.s32 16, 16
          %434 = vsyncadd [#allocation8], %s433
          %s436 = sshll.u32 [#allocation7], 4
          %s437 = int_to_ptr.vmem [resolvable:$true] %s436
          %439 = dma.hbm_to_vmem [thread:$0]  %s7, 16, %s437, [#allocation8]
        $region40: #{resnet_block_forward.1} parent=11 // pred_fallthru
          _
        // Predicated region
        $region41: #{resnet_block_forward.1} parent=11 // pred_check
          %p440 = pneg %p220
        $region42: #{resnet_block_forward.1} parent=11 // pred_check_branch
          %442 = sbr.rel (%p440) target = $region44
        $region43: #{resnet_block_forward.1} parent=11 // pred_region
          _
        $region44: #{resnet_block_forward.1} parent=11 // pred_fallthru
          _
        // Predicated region
        $region45: #{resnet_block_forward.1} parent=11 // pred_check
          %p443 = pneg %p241
        $region46: #{resnet_block_forward.1} parent=11 // pred_check_branch
          %445 = sbr.rel (%p443) target = $region48
        $region47: #{resnet_block_forward.1} parent=11 // pred_region
          %s447 = ssub.s32 16, 16
          %448 = vsyncadd [#allocation8], %s447
          %s450 = sshll.u32 [#allocation9], 4
          %s451 = int_to_ptr.vmem [resolvable:$true] %s450
          %453 = dma.hbm_to_vmem [thread:$0]  %s9, 16, %s451, [#allocation8]
        $region48: #{resnet_block_forward.1} parent=11 // pred_fallthru
          _
        // Predicated region
        $region49: #{resnet_block_forward.1} parent=11 // pred_check
          %p454 = pneg %p262
        $region50: #{resnet_block_forward.1} parent=11 // pred_check_branch
          %456 = sbr.rel (%p454) target = $region52
        $region51: #{resnet_block_forward.1} parent=11 // pred_region
          _
        $region52: #{resnet_block_forward.1} parent=11 // pred_fallthru
          _
        // Predicated region
        $region53: #{resnet_block_forward.1} parent=11 // pred_check
          %p457 = pneg %p283
        $region54: #{resnet_block_forward.1} parent=11 // pred_check_branch
          %459 = sbr.rel (%p457) target = $region56
        $region55: #{resnet_block_forward.1} parent=11 // pred_region
          %s461 = ssub.s32 16, 16
          %462 = vsyncadd [#allocation11], %s461
          %s464 = sshll.u32 [#allocation10], 4
          %s465 = int_to_ptr.vmem [resolvable:$true] %s464
          %467 = dma.hbm_to_vmem [thread:$0]  %s11, 16, %s465, [#allocation11]
        $region56: #{resnet_block_forward.1} parent=11 // pred_fallthru
          _
        // Predicated region
        $region57: #{resnet_block_forward.1} parent=11 // pred_check
          %p468 = pneg %p304
        $region58: #{resnet_block_forward.1} parent=11 // pred_check_branch
          %470 = sbr.rel (%p468) target = $region60
        $region59: #{resnet_block_forward.1} parent=11 // pred_region
          _
        $region60: #{resnet_block_forward.1} parent=11 // pred_fallthru
          _
        // Predicated region
        $region61: #{resnet_block_forward.1} parent=11 // pred_check
          %p471 = pneg %p325
        $region62: #{resnet_block_forward.1} parent=11 // pred_check_branch
          %473 = sbr.rel (%p471) target = $region64
        $region63: #{resnet_block_forward.1} parent=11 // pred_region
          %s475 = ssub.s32 512, 512
          %476 = vsyncadd [#allocation11], %s475
          %s477 = sshll.u32 [#allocation12], 4
          %s478 = int_to_ptr.vmem [resolvable:$true] %s477
          %483 = dma.hbm_to_vmem [thread:$0]  %s13, 512, %s478, [#allocation11], 64, 64, 4
        $region64: #{resnet_block_forward.1} parent=11 // pred_fallthru
          _
        // Predicated region
        $region65: #{resnet_block_forward.1} parent=11 // pred_check
          %p484 = pneg %p346
        $region66: #{resnet_block_forward.1} parent=11 // pred_check_branch
          %486 = sbr.rel (%p484) target = $region68
        $region67: #{resnet_block_forward.1} parent=11 // pred_region
          %s488 = ssub.s32 16, 16
          %489 = vsyncadd [#allocation14], %s488
          %s491 = sshll.u32 [#allocation13], 4
          %s492 = int_to_ptr.vmem [resolvable:$true] %s491
          %494 = dma.hbm_to_vmem [thread:$0]  %s14, 16, %s492, [#allocation14]
        $region68: #{resnet_block_forward.1} parent=11 // pred_fallthru
          _
      $region12: #{resnet_block_forward.1} parent=5 // pred_fallthru
        _
      %p495 = scmp.lt.s32.totalorder %s26, 2
      // Predicated region
      $region69: #{resnet_block_forward.1} parent=5 // pred_check
        %p496 = pneg %p495
      $region70: #{resnet_block_forward.1} parent=5 // pred_check_branch
        %498 = sbr.rel (%p496) target = $region72
      $region71: #{resnet_block_forward.1} parent=5 // pred_region
        // Predicated region
        $region73: #{resnet_block_forward.1} parent=71 // pred_check
          %p499 = pneg %p109
        $region74: #{resnet_block_forward.1} parent=71 // pred_check_branch
          %501 = sbr.rel (%p499) target = $region76
        $region75: #{resnet_block_forward.1} parent=71 // pred_region
          %p502 = scmp.lt.s32.totalorder %s26, 1
          %s503 = scalar_select %p502, %s26, 1
          %s504 = smul.addr %s503, 2
          %s505 = smul.addr %s504, 8
          %s506 = scalar_lea.vmem %s3, %s505
        $region76: #{resnet_block_forward.1} parent=71 // pred_fallthru
          _
      $region72: #{resnet_block_forward.1} parent=5 // pred_fallthru
        _
      %p507 = scmp.le.s32.totalorder 1, %s26
      %p508 = scmp.lt.s32.totalorder %s26, 3
      %p509 = pnand %p507, %p508
      %p510 = pneg %p509
      // Predicated region
      $region77: #{resnet_block_forward.1} parent=5 // pred_check
        _
      $region78: #{resnet_block_forward.1} parent=5 // pred_check_branch
        %512 = sbr.rel (%p509) target = $region80
      $region79: #{resnet_block_forward.1} parent=5 // pred_region
        %s513 = ssub.s32 %s26, 1
        // Predicated region
        $region81: #{resnet_block_forward.1} parent=79 // pred_check
          %p514 = pneg %p89
        $region82: #{resnet_block_forward.1} parent=79 // pred_check_branch
          %516 = sbr.rel (%p514) target = $region84
        $region83: #{resnet_block_forward.1} parent=79 // pred_region
          %517 = dma.done [#allocation3], 16
        $region84: #{resnet_block_forward.1} parent=79 // pred_fallthru
          _
        // Predicated region
        $region85: #{resnet_block_forward.1} parent=79 // pred_check
          %p518 = pneg %p157
        $region86: #{resnet_block_forward.1} parent=79 // pred_check_branch
          %520 = sbr.rel (%p518) target = $region88
        $region87: #{resnet_block_forward.1} parent=79 // pred_region
          %521 = dma.done [#allocation5], 16
        $region88: #{resnet_block_forward.1} parent=79 // pred_fallthru
          _
        // Predicated region
        $region89: #{resnet_block_forward.1} parent=79 // pred_check
          %p522 = pneg %p178
        $region90: #{resnet_block_forward.1} parent=79 // pred_check_branch
          %524 = sbr.rel (%p522) target = $region92
        $region91: #{resnet_block_forward.1} parent=79 // pred_region
          %525 = dma.done [#allocation5], 16
        $region92: #{resnet_block_forward.1} parent=79 // pred_fallthru
          _
        // Predicated region
        $region93: #{resnet_block_forward.1} parent=79 // pred_check
          %p526 = pneg %p199
        $region94: #{resnet_block_forward.1} parent=79 // pred_check_branch
          %528 = sbr.rel (%p526) target = $region96
        $region95: #{resnet_block_forward.1} parent=79 // pred_region
          %529 = dma.done [#allocation8], 16
        $region96: #{resnet_block_forward.1} parent=79 // pred_fallthru
          _
        // Predicated region
        $region97: #{resnet_block_forward.1} parent=79 // pred_check
          %p530 = pneg %p241
        $region98: #{resnet_block_forward.1} parent=79 // pred_check_branch
          %532 = sbr.rel (%p530) target = $region100
        $region99: #{resnet_block_forward.1} parent=79 // pred_region
          %533 = dma.done [#allocation8], 16
        $region100: #{resnet_block_forward.1} parent=79 // pred_fallthru
          _
        // Predicated region
        $region101: #{resnet_block_forward.1} parent=79 // pred_check
          %p534 = pneg %p283
        $region102: #{resnet_block_forward.1} parent=79 // pred_check_branch
          %536 = sbr.rel (%p534) target = $region104
        $region103: #{resnet_block_forward.1} parent=79 // pred_region
          %537 = dma.done [#allocation11], 16
        $region104: #{resnet_block_forward.1} parent=79 // pred_fallthru
          _
        // Predicated region
        $region105: #{resnet_block_forward.1} parent=79 // pred_check
          %p538 = pneg %p325
        $region106: #{resnet_block_forward.1} parent=79 // pred_check_branch
          %540 = sbr.rel (%p538) target = $region108
        $region107: #{resnet_block_forward.1} parent=79 // pred_region
          %541 = dma.done [#allocation11], 512
        $region108: #{resnet_block_forward.1} parent=79 // pred_fallthru
          _
        // Predicated region
        $region109: #{resnet_block_forward.1} parent=79 // pred_check
          %p542 = pneg %p346
        $region110: #{resnet_block_forward.1} parent=79 // pred_check_branch
          %544 = sbr.rel (%p542) target = $region112
        $region111: #{resnet_block_forward.1} parent=79 // pred_region
          %545 = dma.done [#allocation14], 16
        $region112: #{resnet_block_forward.1} parent=79 // pred_fallthru
          _
        %p546 = pneg %p47
        %p547 = pneg %p44
        %p548 = pneg %p68
        %p549 = pneg %p65
        %p550 = pneg %p89
        %p551 = pneg %p86
        %p552 = scmp.lt.s32.totalorder %s31, 1
        %s553 = scalar_select %p552, %s31, 1
        %s554 = smul.addr %s553, 2
        %s555 = smul.addr %s554, 8
        %s556 = scalar_lea.vmem %s3, %s555
        %p557 = pneg %p115
        %p558 = pneg %p112
        %p559 = pneg %p136
        %p560 = pneg %p133
        %p561 = pneg %p157
        %p562 = pneg %p154
        %p563 = pneg %p178
        %p564 = pneg %p175
        %p565 = pneg %p199
        %p566 = pneg %p196
        %p567 = pneg %p220
        %p568 = pneg %p217
        %p569 = pneg %p241
        %p570 = pneg %p238
        %p571 = pneg %p262
        %p572 = pneg %p259
        %p573 = pneg %p283
        %p574 = pneg %p280
        %p575 = pneg %p304
        %p576 = pneg %p301
        %p577 = pneg %p325
        %p578 = pneg %p322
        %p579 = pneg %p346
        %p580 = pneg %p343
        %p581 = pneg %p372
        %p582 = pneg %p369
        %p583 = scmp.lt.s32.totalorder %s31, 1
        %s584 = scalar_select %p583, %s31, 1
        %s585 = smul.addr %s584, 2
        %s586 = smul.addr %s585, 8
        %s587 = scalar_lea.vmem %s15, %s586
        %p588 = scmp.lt.s32.totalorder %s31, 1
        %s589 = scalar_select %p588, %s31, 1
        %s590 = smul.addr %s589, 2
        %s591 = smul.addr %s590, 8
        %s592 = scalar_lea.vmem %s3, %s591
        %p593 = scmp.lt.s32.totalorder %s31, 1
        %s594 = scalar_select %p593, %s31, 1
        %s595 = smul.addr %s594, 2
        %s596 = smul.addr %s595, 8
        %s597 = scalar_lea.vmem %s15, %s596
        %v599 = vlaneseq
        %v600 = vshrl.u32 %v599, 7
        %v601 = vadd.s32 %v600, 8
        %v602 = vlaneseq
        %v603 = vand.u32 %v602, 127
        %v604 = vsub.s32 %v600, 1
        %v605 = vsub.s32 %v601, 1
        %vm606 = vcmp.eq.s32.totalorder %v603, %v604
        %vm607 = vcmp.eq.s32.totalorder %v603, %v605
        %v608 = vsel %vm606, 1, 0
        %v609 = vsel %vm607, 1, 0
        %v610 = vcvt.s32.f32 %v608
        %v611 = vcvt.s32.f32 %v609
        %v612 = vadd.s32 %v600, 1
        %v613 = vadd.s32 %v601, 1
        %vm614 = vcmp.eq.s32.totalorder %v603, %v612
        %vm615 = vcmp.eq.s32.totalorder %v603, %v613
        %v616 = vsel %vm614, 1, 0
        %v617 = vsel %vm615, 1, 0
        %v618 = vcvt.s32.f32 %v616
        %v619 = vcvt.s32.f32 %v617
        %s620 = scalar_lea.vmem %s0, %s31
        %v621 = vld [vmem:[%s620] sm:$0x1]
        %v622 = vxor.u32 %v621, 2147483648
        %v623 = vmul.f32 %v622, 1.442695
        %v624 = vpow.pop %v623
        %v625 = vadd.f32 %v624, 1.0
        %v626 = vrcp.pop %v625
        %v627 = vmul.f32 1.0, %v626
        %v628 = vmul.f32 %v621, %v627
        %v629 = vld [vmem:[%s1] sm:$0xff]
        %v630 = vld [vmem:[%s1 + $0x8] sm:$0xff]
        %v631 = vld [vmem:[%s1 + $0x10] sm:$0xff]
        %v632 = vld [vmem:[%s1 + $0x18] sm:$0xff]
        %v633 = vld [vmem:[#allocation2] sm:$0x1]
        %vm634 = vcmask 261120
        %v636 = vsel %vm634, %v628, 0
        %638 = vmatprep.subr.mxu0 0.0
        %639 = vmatpush1.msra.mxu0 %v629
        %640 = vmatprep.subr.mxu0 0.0
        %641 = vmatpush1.msra.mxu0 %v630
        %642 = vmatprep.subr.mxu0 0.0
        %643 = vmatpush1.msra.mxu0 %v631
        %644 = vmatprep.subr.mxu0 0.0
        %645 = vmatpush1.msra.mxu0 %v632
        %646 = vmatprep.subr.mxu0 0.0
        %647 = vmatpush1.msra.mxu0 0.0
        %648 = vmatprep.subr.mxu0 0.0
        %649 = vmatpush1.msra.mxu0 0.0
        %650 = vmatprep.subr.mxu0 0.0
        %651 = vmatpush1.msra.mxu0 0.0
        %652 = vmatprep.subr.mxu0 0.0
        %653 = vmatpush1.msra.mxu0 0.0
        %654 = vmatprep.subr.mxu0 0.0
        %655 = vmatpush1.msra.mxu0 0.0
        %656 = vmatprep.subr.mxu0 0.0
        %657 = vmatpush1.msra.mxu0 0.0
        %658 = vmatprep.subr.mxu0 0.0
        %659 = vmatpush1.msra.mxu0 0.0
        %660 = vmatprep.subr.mxu0 0.0
        %661 = vmatpush1.msra.mxu0 0.0
        %662 = vmatprep.subr.mxu0 0.0
        %663 = vmatpush1.msra.mxu0 0.0
        %664 = vmatprep.subr.mxu0 0.0
        %665 = vmatpush1.msra.mxu0 0.0
        %666 = vmatprep.subr.mxu0 0.0
        %667 = vmatpush1.msra.mxu0 0.0
        %668 = vmatprep.subr.mxu0 0.0
        %669 = vmatpush1.msra.mxu0 0.0
        %670 = vmatprep.subr.mxu0 0.0
        %671 = vmatpush1.msra.mxu0 0.0
        %672 = vmatprep.subr.mxu0 0.0
        %673 = vmatpush1.msra.mxu0 0.0
        %674 = vmatprep.subr.mxu0 0.0
        %675 = vmatpush1.msra.mxu0 0.0
        %676 = vmatprep.subr.mxu0 0.0
        %677 = vmatpush1.msra.mxu0 0.0
        %678 = vmatprep.subr.mxu0 0.0
        %679 = vmatpush1.msra.mxu0 0.0
        %680 = vmatprep.subr.mxu0 0.0
        %681 = vmatpush1.msra.mxu0 0.0
        %682 = vmatprep.subr.mxu0 0.0
        %683 = vmatpush1.msra.mxu0 0.0
        %684 = vmatprep.subr.mxu0 0.0
        %685 = vmatpush1.msra.mxu0 0.0
        %686 = vmatprep.subr.mxu0 0.0
        %687 = vmatpush1.msra.mxu0 0.0
        %688 = vmatprep.subr.mxu0 0.0
        %689 = vmatpush1.msra.mxu0 0.0
        %690 = vmatprep.subr.mxu0 0.0
        %691 = vmatpush1.msra.mxu0 0.0
        %692 = vmatprep.subr.mxu0 0.0
        %693 = vmatpush1.msra.mxu0 0.0
        %694 = vmatprep.subr.mxu0 0.0
        %695 = vmatpush1.msra.mxu0 0.0
        %696 = vmatprep.subr.mxu0 0.0
        %697 = vmatpush1.msra.mxu0 0.0
        %698 = vmatprep.subr.mxu0 0.0
        %699 = vmatpush1.msra.mxu0 0.0
        %700 = vmatprep.subr.mxu0 0.0
        %701 = vmatpush1.msra.mxu0 0.0
        %702 = vmatprep.mubr.f32.mxu0 0.0
        %703 = vmatmul.mubr.f32.gmra.mrb[0].mxu0 %v636
        %v704 = vpop.f32.mrb[0].mxu0
        %v705 = vadd.f32 %v633, %v704
        %v706 = vpop.f32.mrb[0].mxu0
        %707 = vdwg.mxu0
        %v708 = vld [vmem:[%s592] sm:$0xff]
        %v709 = vld [vmem:[%s592 + $0x8] sm:$0xff]
        %v710 = vlaneseq
        %v711 = vshrl.u32 %v710, 7
        %v712 = vsub.s32 0, %v711
        %v713 = vrot.slane %v705, %v712
        %v714 = vadd.f32 %v708, %v713
        %v715 = vadd.f32 %v709, %v713
        %v716 = vpack.c.bf16 %v715, %v714
        %v717 = vld [vmem:[%s4] sm:$0xf]
        %v718 = vld [vmem:[%s4 + $0x4] sm:$0xf]
        %v719 = vld [vmem:[%s4 + $0x8] sm:$0xf]
        %v720 = vld [vmem:[%s4 + $0xc] sm:$0xf]
        %v721 = vld [vmem:[%s4 + $0x10] sm:$0xf]
        %v722 = vld [vmem:[%s4 + $0x14] sm:$0xf]
        %v723 = vld [vmem:[%s4 + $0x18] sm:$0xf]
        %v724 = vld [vmem:[%s4 + $0x1c] sm:$0xf]
        %v733 = vunpack.c.l.b16 %v717
        %v734 = vunpack.c.l.b16 %v718
        %v735 = vunpack.c.l.b16 %v719
        %v736 = vunpack.c.l.b16 %v720
        %v737 = vunpack.c.l.b16 %v721
        %v738 = vunpack.c.l.b16 %v722
        %v739 = vunpack.c.l.b16 %v723
        %v740 = vunpack.c.l.b16 %v724
        %v741 = vpack.c.b16 %v734, %v733
        %v742 = vpack.c.b16 %v736, %v735
        %v743 = vpack.c.b16 %v738, %v737
        %v744 = vpack.c.b16 %v740, %v739
        %vm749 = vcmask 523264
        %v751 = vsel %vm749, %v716, 0
        %753 = vmatprep.subr.bf16.mxu0 0
        %754 = vmatpush1.bf16.msra.mxu0 %v741
        %755 = vmatprep.subr.bf16.mxu0 0
        %756 = vmatpush1.bf16.msra.mxu0 %v742
        %757 = vmatprep.subr.bf16.mxu0 0
        %758 = vmatpush1.bf16.msra.mxu0 %v743
        %759 = vmatprep.subr.bf16.mxu0 0
        %760 = vmatpush1.bf16.msra.mxu0 %v744
        %761 = vmatprep.subr.bf16.mxu0 0
        %762 = vmatpush1.bf16.msra.mxu0 0
        %763 = vmatprep.subr.bf16.mxu0 0
        %764 = vmatpush1.bf16.msra.mxu0 0
        %765 = vmatprep.subr.bf16.mxu0 0
        %766 = vmatpush1.bf16.msra.mxu0 0
        %767 = vmatprep.subr.bf16.mxu0 0
        %768 = vmatpush1.bf16.msra.mxu0 0
        %769 = vmatprep.subr.bf16.mxu0 0
        %770 = vmatpush1.bf16.msra.mxu0 0
        %771 = vmatprep.subr.bf16.mxu0 0
        %772 = vmatpush1.bf16.msra.mxu0 0
        %773 = vmatprep.subr.bf16.mxu0 0
        %774 = vmatpush1.bf16.msra.mxu0 0
        %775 = vmatprep.subr.bf16.mxu0 0
        %776 = vmatpush1.bf16.msra.mxu0 0
        %777 = vmatprep.subr.bf16.mxu0 0
        %778 = vmatpush1.bf16.msra.mxu0 0
        %779 = vmatprep.subr.bf16.mxu0 0
        %780 = vmatpush1.bf16.msra.mxu0 0
        %781 = vmatprep.subr.bf16.mxu0 0
        %782 = vmatpush1.bf16.msra.mxu0 0
        %783 = vmatprep.subr.bf16.mxu0 0
        %784 = vmatpush1.bf16.msra.mxu0 0
        %785 = vmatprep.mubr.bf16.mxu0 0
        %786 = vmatmul.mubr.bf16.gmra.mrb[0].mxu0 %v751
        %v787 = vpop.f32.mrb[0].mxu0
        %v788 = vadd.f32 0.0, %v787
        %v789 = vpop.f32.mrb[0].mxu0
        %v790 = vpop.f32.mrb[0].mxu0
        %v791 = vadd.f32 0.0, %v790
        %v792 = vpop.f32.mrb[0].mxu0
        %793 = vdwg.mxu0
        %s794 = scalar_lea.vmem %s4, 32
        %v795 = vld [vmem:[%s794] sm:$0xf]
        %v796 = vld [vmem:[%s794 + $0x4] sm:$0xf]
        %v797 = vld [vmem:[%s794 + $0x8] sm:$0xf]
        %v798 = vld [vmem:[%s794 + $0xc] sm:$0xf]
        %v799 = vld [vmem:[%s794 + $0x10] sm:$0xf]
        %v800 = vld [vmem:[%s794 + $0x14] sm:$0xf]
        %v801 = vld [vmem:[%s794 + $0x18] sm:$0xf]
        %v802 = vld [vmem:[%s794 + $0x1c] sm:$0xf]
        %v811 = vunpack.c.l.b16 %v795
        %v812 = vunpack.c.l.b16 %v796
        %v813 = vunpack.c.l.b16 %v797
        %v814 = vunpack.c.l.b16 %v798
        %v815 = vunpack.c.l.b16 %v799
        %v816 = vunpack.c.l.b16 %v800
        %v817 = vunpack.c.l.b16 %v801
        %v818 = vunpack.c.l.b16 %v802
        %v819 = vpack.c.b16 %v812, %v811
        %v820 = vpack.c.b16 %v814, %v813
        %v821 = vpack.c.b16 %v816, %v815
        %v822 = vpack.c.b16 %v818, %v817
        %827 = vmatprep.subr.bf16.mxu0 0
        %828 = vmatpush1.bf16.msra.mxu0 %v819
        %829 = vmatprep.subr.bf16.mxu0 0
        %830 = vmatpush1.bf16.msra.mxu0 %v820
        %831 = vmatprep.subr.bf16.mxu0 0
        %832 = vmatpush1.bf16.msra.mxu0 %v821
        %833 = vmatprep.subr.bf16.mxu0 0
        %834 = vmatpush1.bf16.msra.mxu0 %v822
        %835 = vmatprep.subr.bf16.mxu0 0
        %836 = vmatpush1.bf16.msra.mxu0 0
        %837 = vmatprep.subr.bf16.mxu0 0
        %838 = vmatpush1.bf16.msra.mxu0 0
        %839 = vmatprep.subr.bf16.mxu0 0
        %840 = vmatpush1.bf16.msra.mxu0 0
        %841 = vmatprep.subr.bf16.mxu0 0
        %842 = vmatpush1.bf16.msra.mxu0 0
        %843 = vmatprep.subr.bf16.mxu0 0
        %844 = vmatpush1.bf16.msra.mxu0 0
        %845 = vmatprep.subr.bf16.mxu0 0
        %846 = vmatpush1.bf16.msra.mxu0 0
        %847 = vmatprep.subr.bf16.mxu0 0
        %848 = vmatpush1.bf16.msra.mxu0 0
        %849 = vmatprep.subr.bf16.mxu0 0
        %850 = vmatpush1.bf16.msra.mxu0 0
        %851 = vmatprep.subr.bf16.mxu0 0
        %852 = vmatpush1.bf16.msra.mxu0 0
        %853 = vmatprep.subr.bf16.mxu0 0
        %854 = vmatpush1.bf16.msra.mxu0 0
        %855 = vmatprep.subr.bf16.mxu0 0
        %856 = vmatpush1.bf16.msra.mxu0 0
        %857 = vmatprep.subr.bf16.mxu0 0
        %858 = vmatpush1.bf16.msra.mxu0 0
        %859 = vmatprep.mubr.bf16.mxu0 0
        %860 = vmatmul.mubr.bf16.gmra.mrb[0].mxu0 %v751
        %v861 = vpop.f32.mrb[0].mxu0
        %v862 = vadd.f32 0.0, %v861
        %v863 = vpop.f32.mrb[0].mxu0
        %v864 = vpop.f32.mrb[0].mxu0
        %v865 = vadd.f32 0.0, %v864
        %v866 = vpop.f32.mrb[0].mxu0
        %867 = vdwg.mxu0
        %s868 = scalar_lea.vmem %s4, 64
        %v869 = vld [vmem:[%s868] sm:$0xf]
        %v870 = vld [vmem:[%s868 + $0x4] sm:$0xf]
        %v871 = vld [vmem:[%s868 + $0x8] sm:$0xf]
        %v872 = vld [vmem:[%s868 + $0xc] sm:$0xf]
        %v873 = vld [vmem:[%s868 + $0x10] sm:$0xf]
        %v874 = vld [vmem:[%s868 + $0x14] sm:$0xf]
        %v875 = vld [vmem:[%s868 + $0x18] sm:$0xf]
        %v876 = vld [vmem:[%s868 + $0x1c] sm:$0xf]
        %v885 = vunpack.c.l.b16 %v869
        %v886 = vunpack.c.l.b16 %v870
        %v887 = vunpack.c.l.b16 %v871
        %v888 = vunpack.c.l.b16 %v872
        %v889 = vunpack.c.l.b16 %v873
        %v890 = vunpack.c.l.b16 %v874
        %v891 = vunpack.c.l.b16 %v875
        %v892 = vunpack.c.l.b16 %v876
        %v893 = vpack.c.b16 %v886, %v885
        %v894 = vpack.c.b16 %v888, %v887
        %v895 = vpack.c.b16 %v890, %v889
        %v896 = vpack.c.b16 %v892, %v891
        %901 = vmatprep.subr.bf16.mxu0 0
        %902 = vmatpush1.bf16.msra.mxu0 %v893
        %903 = vmatprep.subr.bf16.mxu0 0
        %904 = vmatpush1.bf16.msra.mxu0 %v894
        %905 = vmatprep.subr.bf16.mxu0 0
        %906 = vmatpush1.bf16.msra.mxu0 %v895
        %907 = vmatprep.subr.bf16.mxu0 0
        %908 = vmatpush1.bf16.msra.mxu0 %v896
        %909 = vmatprep.subr.bf16.mxu0 0
        %910 = vmatpush1.bf16.msra.mxu0 0
        %911 = vmatprep.subr.bf16.mxu0 0
        %912 = vmatpush1.bf16.msra.mxu0 0
        %913 = vmatprep.subr.bf16.mxu0 0
        %914 = vmatpush1.bf16.msra.mxu0 0
        %915 = vmatprep.subr.bf16.mxu0 0
        %916 = vmatpush1.bf16.msra.mxu0 0
        %917 = vmatprep.subr.bf16.mxu0 0
        %918 = vmatpush1.bf16.msra.mxu0 0
        %919 = vmatprep.subr.bf16.mxu0 0
        %920 = vmatpush1.bf16.msra.mxu0 0
        %921 = vmatprep.subr.bf16.mxu0 0
        %922 = vmatpush1.bf16.msra.mxu0 0
        %923 = vmatprep.subr.bf16.mxu0 0
        %924 = vmatpush1.bf16.msra.mxu0 0
        %925 = vmatprep.subr.bf16.mxu0 0
        %926 = vmatpush1.bf16.msra.mxu0 0
        %927 = vmatprep.subr.bf16.mxu0 0
        %928 = vmatpush1.bf16.msra.mxu0 0
        %929 = vmatprep.subr.bf16.mxu0 0
        %930 = vmatpush1.bf16.msra.mxu0 0
        %931 = vmatprep.subr.bf16.mxu0 0
        %932 = vmatpush1.bf16.msra.mxu0 0
        %933 = vmatprep.mubr.bf16.mxu0 0
        %934 = vmatmul.mubr.bf16.gmra.mrb[0].mxu0 %v751
        %v935 = vpop.f32.mrb[0].mxu0
        %v936 = vadd.f32 0.0, %v935
        %v937 = vpop.f32.mrb[0].mxu0
        %v938 = vpop.f32.mrb[0].mxu0
        %v939 = vadd.f32 0.0, %v938
        %v940 = vpop.f32.mrb[0].mxu0
        %941 = vdwg.mxu0
        %vm942 = vcmask 130048
        %v944 = vsel %vm942, %v610, 0
        %v947 = vsel %vm942, %v611, 0
        %949 = vmatprep.subr.mxu0 0.0
        %950 = vmatpush1.msra.mxu0 %v788
        %951 = vmatprep.subr.mxu0 0.0
        %952 = vmatpush1.msra.mxu0 %v791
        %953 = vmatprep.subr.mxu0 0.0
        %954 = vmatpush1.msra.mxu0 0.0
        %955 = vmatprep.subr.mxu0 0.0
        %956 = vmatpush1.msra.mxu0 0.0
        %957 = vmatprep.subr.mxu0 0.0
        %958 = vmatpush1.msra.mxu0 0.0
        %959 = vmatprep.subr.mxu0 0.0
        %960 = vmatpush1.msra.mxu0 0.0
        %961 = vmatprep.subr.mxu0 0.0
        %962 = vmatpush1.msra.mxu0 0.0
        %963 = vmatprep.subr.mxu0 0.0
        %964 = vmatpush1.msra.mxu0 0.0
        %965 = vmatprep.subr.mxu0 0.0
        %966 = vmatpush1.msra.mxu0 0.0
        %967 = vmatprep.subr.mxu0 0.0
        %968 = vmatpush1.msra.mxu0 0.0
        %969 = vmatprep.subr.mxu0 0.0
        %970 = vmatpush1.msra.mxu0 0.0
        %971 = vmatprep.subr.mxu0 0.0
        %972 = vmatpush1.msra.mxu0 0.0
        %973 = vmatprep.subr.mxu0 0.0
        %974 = vmatpush1.msra.mxu0 0.0
        %975 = vmatprep.subr.mxu0 0.0
        %976 = vmatpush1.msra.mxu0 0.0
        %977 = vmatprep.subr.mxu0 0.0
        %978 = vmatpush1.msra.mxu0 0.0
        %979 = vmatprep.subr.mxu0 0.0
        %980 = vmatpush1.msra.mxu0 0.0
        %981 = vmatprep.subr.mxu0 0.0
        %982 = vmatpush1.msra.mxu0 0.0
        %983 = vmatprep.subr.mxu0 0.0
        %984 = vmatpush1.msra.mxu0 0.0
        %985 = vmatprep.subr.mxu0 0.0
        %986 = vmatpush1.msra.mxu0 0.0
        %987 = vmatprep.subr.mxu0 0.0
        %988 = vmatpush1.msra.mxu0 0.0
        %989 = vmatprep.subr.mxu0 0.0
        %990 = vmatpush1.msra.mxu0 0.0
        %991 = vmatprep.subr.mxu0 0.0
        %992 = vmatpush1.msra.mxu0 0.0
        %993 = vmatprep.subr.mxu0 0.0
        %994 = vmatpush1.msra.mxu0 0.0
        %995 = vmatprep.subr.mxu0 0.0
        %996 = vmatpush1.msra.mxu0 0.0
        %997 = vmatprep.subr.mxu0 0.0
        %998 = vmatpush1.msra.mxu0 0.0
        %999 = vmatprep.subr.mxu0 0.0
        %1000 = vmatpush1.msra.mxu0 0.0
        %1001 = vmatprep.subr.mxu0 0.0
        %1002 = vmatpush1.msra.mxu0 0.0
        %1003 = vmatprep.subr.mxu0 0.0
        %1004 = vmatpush1.msra.mxu0 0.0
        %1005 = vmatprep.subr.mxu0 0.0
        %1006 = vmatpush1.msra.mxu0 0.0
        %1007 = vmatprep.subr.mxu0 0.0
        %1008 = vmatpush1.msra.mxu0 0.0
        %1009 = vmatprep.subr.mxu0 0.0
        %1010 = vmatpush1.msra.mxu0 0.0
        %1011 = vmatprep.subr.mxu0 0.0
        %1012 = vmatpush1.msra.mxu0 0.0
        %1013 = vmatprep.mubr.f32.mxu0 0.0
        %1014 = vmatmul.mubr.f32.gmra.mrb[0].mxu0 %v944
        %v1015 = vpop.f32.mrb[0].mxu0
        %v1016 = vadd.f32 %v862, %v1015
        %v1017 = vpop.f32.mrb[0].mxu0
        %1018 = vmatprep.mubr.f32.mxu0 0.0
        %1019 = vmatmul.mubr.f32.gmra.mrb[0].mxu0 %v947
        %v1020 = vpop.f32.mrb[0].mxu0
        %v1021 = vadd.f32 %v865, %v1020
        %v1022 = vpop.f32.mrb[0].mxu0
        %1023 = vdwg.mxu0
        %v1025 = vsel %vm942, %v618, 0
        %v1028 = vsel %vm942, %v619, 0
        %1030 = vmatprep.subr.mxu0 0.0
        %1031 = vmatpush1.msra.mxu0 %v936
        %1032 = vmatprep.subr.mxu0 0.0
        %1033 = vmatpush1.msra.mxu0 %v939
        %1034 = vmatprep.subr.mxu0 0.0
        %1035 = vmatpush1.msra.mxu0 0.0
        %1036 = vmatprep.subr.mxu0 0.0
        %1037 = vmatpush1.msra.mxu0 0.0
        %1038 = vmatprep.subr.mxu0 0.0
        %1039 = vmatpush1.msra.mxu0 0.0
        %1040 = vmatprep.subr.mxu0 0.0
        %1041 = vmatpush1.msra.mxu0 0.0
        %1042 = vmatprep.subr.mxu0 0.0
        %1043 = vmatpush1.msra.mxu0 0.0
        %1044 = vmatprep.subr.mxu0 0.0
        %1045 = vmatpush1.msra.mxu0 0.0
        %1046 = vmatprep.subr.mxu0 0.0
        %1047 = vmatpush1.msra.mxu0 0.0
        %1048 = vmatprep.subr.mxu0 0.0
        %1049 = vmatpush1.msra.mxu0 0.0
        %1050 = vmatprep.subr.mxu0 0.0
        %1051 = vmatpush1.msra.mxu0 0.0
        %1052 = vmatprep.subr.mxu0 0.0
        %1053 = vmatpush1.msra.mxu0 0.0
        %1054 = vmatprep.subr.mxu0 0.0
        %1055 = vmatpush1.msra.mxu0 0.0
        %1056 = vmatprep.subr.mxu0 0.0
        %1057 = vmatpush1.msra.mxu0 0.0
        %1058 = vmatprep.subr.mxu0 0.0
        %1059 = vmatpush1.msra.mxu0 0.0
        %1060 = vmatprep.subr.mxu0 0.0
        %1061 = vmatpush1.msra.mxu0 0.0
        %1062 = vmatprep.subr.mxu0 0.0
        %1063 = vmatpush1.msra.mxu0 0.0
        %1064 = vmatprep.subr.mxu0 0.0
        %1065 = vmatpush1.msra.mxu0 0.0
        %1066 = vmatprep.subr.mxu0 0.0
        %1067 = vmatpush1.msra.mxu0 0.0
        %1068 = vmatprep.subr.mxu0 0.0
        %1069 = vmatpush1.msra.mxu0 0.0
        %1070 = vmatprep.subr.mxu0 0.0
        %1071 = vmatpush1.msra.mxu0 0.0
        %1072 = vmatprep.subr.mxu0 0.0
        %1073 = vmatpush1.msra.mxu0 0.0
        %1074 = vmatprep.subr.mxu0 0.0
        %1075 = vmatpush1.msra.mxu0 0.0
        %1076 = vmatprep.subr.mxu0 0.0
        %1077 = vmatpush1.msra.mxu0 0.0
        %1078 = vmatprep.subr.mxu0 0.0
        %1079 = vmatpush1.msra.mxu0 0.0
        %1080 = vmatprep.subr.mxu0 0.0
        %1081 = vmatpush1.msra.mxu0 0.0
        %1082 = vmatprep.subr.mxu0 0.0
        %1083 = vmatpush1.msra.mxu0 0.0
        %1084 = vmatprep.subr.mxu0 0.0
        %1085 = vmatpush1.msra.mxu0 0.0
        %1086 = vmatprep.subr.mxu0 0.0
        %1087 = vmatpush1.msra.mxu0 0.0
        %1088 = vmatprep.subr.mxu0 0.0
        %1089 = vmatpush1.msra.mxu0 0.0
        %1090 = vmatprep.subr.mxu0 0.0
        %1091 = vmatpush1.msra.mxu0 0.0
        %1092 = vmatprep.subr.mxu0 0.0
        %1093 = vmatpush1.msra.mxu0 0.0
        %1094 = vmatprep.mubr.f32.mxu0 0.0
        %1095 = vmatmul.mubr.f32.gmra.mrb[0].mxu0 %v1025
        %v1096 = vpop.f32.mrb[0].mxu0
        %v1097 = vadd.f32 0.0, %v1096
        %v1098 = vpop.f32.mrb[0].mxu0
        %1099 = vmatprep.mubr.f32.mxu0 0.0
        %1100 = vmatmul.mubr.f32.gmra.mrb[0].mxu0 %v1028
        %v1101 = vpop.f32.mrb[0].mxu0
        %v1102 = vadd.f32 0.0, %v1101
        %v1103 = vpop.f32.mrb[0].mxu0
        %1104 = vdwg.mxu0
        %v1105 = vadd.f32 %v1016, %v1097
        %v1106 = vadd.f32 %v1021, %v1102
        %v1107 = vld [vmem:[#allocation4] sm:$0x1]
        %v1109 = vlaneseq
        %v1110 = vshrl.u32 %v1109, 7
        %v1111 = vsub.s32 0, %v1110
        %v1112 = vrot.slane %v1107, %v1111
        %v1114 = vadd.f32 %v1105, %v1112
        %v1115 = vadd.f32 %v1106, %v1112
        %v1116 = vadd.f32 %v1114, %v1115
        %v1117 = vrot.slane %v1116, 4
        %v1118 = vadd.f32 %v1116, %v1117
        %v1119 = vrot.slane %v1118, 2
        %v1120 = vadd.f32 %v1118, %v1119
        %v1121 = vrot.slane %v1120, 1
        %v1122 = vadd.f32 %v1120, %v1121
        %v1123 = vld [vmem:[%s12] sm:$0xff]
        %v1124 = vld [vmem:[%s12 + $0x8] sm:$0xff]
        %v1125 = vld [vmem:[%s12 + $0x10] sm:$0xff]
        %v1126 = vld [vmem:[%s12 + $0x18] sm:$0xff]
        %v1127 = vld [vmem:[%s12 + $0x20] sm:$0xff]
        %v1128 = vld [vmem:[%s12 + $0x28] sm:$0xff]
        %v1129 = vld [vmem:[%s12 + $0x30] sm:$0xff]
        %v1130 = vld [vmem:[%s12 + $0x38] sm:$0xff]
        %v1131 = vld [vmem:[%s12 + $0x40] sm:$0xff]
        %v1132 = vld [vmem:[%s12 + $0x48] sm:$0xff]
        %v1133 = vld [vmem:[%s12 + $0x50] sm:$0xff]
        %v1134 = vld [vmem:[%s12 + $0x58] sm:$0xff]
        %v1135 = vld [vmem:[%s12 + $0x60] sm:$0xff]
        %v1136 = vld [vmem:[%s12 + $0x68] sm:$0xff]
        %v1137 = vld [vmem:[%s12 + $0x70] sm:$0xff]
        %v1138 = vld [vmem:[%s12 + $0x78] sm:$0xff]
        %1139 = vmatprep.subr.mxu0 0.0
        %1140 = vmatpush1.msra.mxu0 %v1123
        %1141 = vmatprep.subr.mxu0 0.0
        %1142 = vmatpush1.msra.mxu0 %v1124
        %1143 = vmatprep.subr.mxu0 0.0
        %1144 = vmatpush1.msra.mxu0 %v1125
        %1145 = vmatprep.subr.mxu0 0.0
        %1146 = vmatpush1.msra.mxu0 %v1126
        %1147 = vmatprep.subr.mxu0 0.0
        %1148 = vmatpush1.msra.mxu0 %v1127
        %1149 = vmatprep.subr.mxu0 0.0
        %1150 = vmatpush1.msra.mxu0 %v1128
        %1151 = vmatprep.subr.mxu0 0.0
        %1152 = vmatpush1.msra.mxu0 %v1129
        %1153 = vmatprep.subr.mxu0 0.0
        %1154 = vmatpush1.msra.mxu0 %v1130
        %1155 = vmatprep.subr.mxu0 0.0
        %1156 = vmatpush1.msra.mxu0 %v1131
        %1157 = vmatprep.subr.mxu0 0.0
        %1158 = vmatpush1.msra.mxu0 %v1132
        %1159 = vmatprep.subr.mxu0 0.0
        %1160 = vmatpush1.msra.mxu0 %v1133
        %1161 = vmatprep.subr.mxu0 0.0
        %1162 = vmatpush1.msra.mxu0 %v1134
        %1163 = vmatprep.subr.mxu0 0.0
        %1164 = vmatpush1.msra.mxu0 %v1135
        %1165 = vmatprep.subr.mxu0 0.0
        %1166 = vmatpush1.msra.mxu0 %v1136
        %1167 = vmatprep.subr.mxu0 0.0
        %1168 = vmatpush1.msra.mxu0 %v1137
        %1169 = vmatprep.subr.mxu0 0.0
        %1170 = vmatpush1.msra.mxu0 %v1138
        %1171 = vmatprep.subr.mxu0 0.0
        %1172 = vmatpush1.msra.mxu0 0.0
        %1173 = vmatprep.subr.mxu0 0.0
        %1174 = vmatpush1.msra.mxu0 0.0
        %1175 = vmatprep.subr.mxu0 0.0
        %1176 = vmatpush1.msra.mxu0 0.0
        %1177 = vmatprep.subr.mxu0 0.0
        %1178 = vmatpush1.msra.mxu0 0.0
        %1179 = vmatprep.subr.mxu0 0.0
        %1180 = vmatpush1.msra.mxu0 0.0
        %1181 = vmatprep.subr.mxu0 0.0
        %1182 = vmatpush1.msra.mxu0 0.0
        %1183 = vmatprep.subr.mxu0 0.0
        %1184 = vmatpush1.msra.mxu0 0.0
        %1185 = vmatprep.subr.mxu0 0.0
        %1186 = vmatpush1.msra.mxu0 0.0
        %1187 = vmatprep.subr.mxu0 0.0
        %1188 = vmatpush1.msra.mxu0 0.0
        %1189 = vmatprep.subr.mxu0 0.0
        %1190 = vmatpush1.msra.mxu0 0.0
        %1191 = vmatprep.subr.mxu0 0.0
        %1192 = vmatpush1.msra.mxu0 0.0
        %1193 = vmatprep.subr.mxu0 0.0
        %1194 = vmatpush1.msra.mxu0 0.0
        %1195 = vmatprep.subr.mxu0 0.0
        %1196 = vmatpush1.msra.mxu0 0.0
        %1197 = vmatprep.subr.mxu0 0.0
        %1198 = vmatpush1.msra.mxu0 0.0
        %1199 = vmatprep.subr.mxu0 0.0
        %1200 = vmatpush1.msra.mxu0 0.0
        %1201 = vmatprep.subr.mxu0 0.0
        %1202 = vmatpush1.msra.mxu0 0.0
        %1203 = vmatprep.mubr.f32.mxu0 0.0
        %1204 = vmatmul.mubr.f32.gmra.mrb[0].mxu0 %v1122
        %v1205 = vpop.f32.mrb[0].mxu0
        %v1206 = vadd.f32 0.0, %v1205
        %v1207 = vpop.f32.mrb[0].mxu0
        %1208 = vdwg.mxu0
        %v1209 = vmul.f32 %v1206, 0.001953125
        %v1210 = vlaneseq
        %v1211 = vshrl.u32 %v1210, 7
        %v1212 = vsub.s32 0, %v1211
        %v1213 = vrot.slane %v1209, %v1212
        %v1214 = vsub.f32 %v1114, %v1213
        %v1215 = vsub.f32 %v1115, %v1213
        %v1216 = vmul.f32 %v1214, %v1214
        %v1217 = vmul.f32 %v1215, %v1215
        %v1218 = vadd.f32 %v1216, %v1217
        %v1219 = vrot.slane %v1218, 4
        %v1220 = vadd.f32 %v1218, %v1219
        %v1221 = vrot.slane %v1220, 2
        %v1222 = vadd.f32 %v1220, %v1221
        %v1223 = vrot.slane %v1222, 1
        %v1224 = vadd.f32 %v1222, %v1223
        %1225 = vmatprep.subr.mxu0 0.0
        %1226 = vmatpush1.msra.mxu0 %v1123
        %1227 = vmatprep.subr.mxu0 0.0
        %1228 = vmatpush1.msra.mxu0 %v1124
        %1229 = vmatprep.subr.mxu0 0.0
        %1230 = vmatpush1.msra.mxu0 %v1125
        %1231 = vmatprep.subr.mxu0 0.0
        %1232 = vmatpush1.msra.mxu0 %v1126
        %1233 = vmatprep.subr.mxu0 0.0
        %1234 = vmatpush1.msra.mxu0 %v1127
        %1235 = vmatprep.subr.mxu0 0.0
        %1236 = vmatpush1.msra.mxu0 %v1128
        %1237 = vmatprep.subr.mxu0 0.0
        %1238 = vmatpush1.msra.mxu0 %v1129
        %1239 = vmatprep.subr.mxu0 0.0
        %1240 = vmatpush1.msra.mxu0 %v1130
        %1241 = vmatprep.subr.mxu0 0.0
        %1242 = vmatpush1.msra.mxu0 %v1131
        %1243 = vmatprep.subr.mxu0 0.0
        %1244 = vmatpush1.msra.mxu0 %v1132
        %1245 = vmatprep.subr.mxu0 0.0
        %1246 = vmatpush1.msra.mxu0 %v1133
        %1247 = vmatprep.subr.mxu0 0.0
        %1248 = vmatpush1.msra.mxu0 %v1134
        %1249 = vmatprep.subr.mxu0 0.0
        %1250 = vmatpush1.msra.mxu0 %v1135
        %1251 = vmatprep.subr.mxu0 0.0
        %1252 = vmatpush1.msra.mxu0 %v1136
        %1253 = vmatprep.subr.mxu0 0.0
        %1254 = vmatpush1.msra.mxu0 %v1137
        %1255 = vmatprep.subr.mxu0 0.0
        %1256 = vmatpush1.msra.mxu0 %v1138
        %1257 = vmatprep.subr.mxu0 0.0
        %1258 = vmatpush1.msra.mxu0 0.0
        %1259 = vmatprep.subr.mxu0 0.0
        %1260 = vmatpush1.msra.mxu0 0.0
        %1261 = vmatprep.subr.mxu0 0.0
        %1262 = vmatpush1.msra.mxu0 0.0
        %1263 = vmatprep.subr.mxu0 0.0
        %1264 = vmatpush1.msra.mxu0 0.0
        %1265 = vmatprep.subr.mxu0 0.0
        %1266 = vmatpush1.msra.mxu0 0.0
        %1267 = vmatprep.subr.mxu0 0.0
        %1268 = vmatpush1.msra.mxu0 0.0
        %1269 = vmatprep.subr.mxu0 0.0
        %1270 = vmatpush1.msra.mxu0 0.0
        %1271 = vmatprep.subr.mxu0 0.0
        %1272 = vmatpush1.msra.mxu0 0.0
        %1273 = vmatprep.subr.mxu0 0.0
        %1274 = vmatpush1.msra.mxu0 0.0
        %1275 = vmatprep.subr.mxu0 0.0
        %1276 = vmatpush1.msra.mxu0 0.0
        %1277 = vmatprep.subr.mxu0 0.0
        %1278 = vmatpush1.msra.mxu0 0.0
        %1279 = vmatprep.subr.mxu0 0.0
        %1280 = vmatpush1.msra.mxu0 0.0
        %1281 = vmatprep.subr.mxu0 0.0
        %1282 = vmatpush1.msra.mxu0 0.0
        %1283 = vmatprep.subr.mxu0 0.0
        %1284 = vmatpush1.msra.mxu0 0.0
        %1285 = vmatprep.subr.mxu0 0.0
        %1286 = vmatpush1.msra.mxu0 0.0
        %1287 = vmatprep.subr.mxu0 0.0
        %1288 = vmatpush1.msra.mxu0 0.0
        %1289 = vmatprep.mubr.f32.mxu0 0.0
        %1290 = vmatmul.mubr.f32.gmra.mrb[0].mxu0 %v1224
        %v1291 = vpop.f32.mrb[0].mxu0
        %v1292 = vadd.f32 0.0, %v1291
        %v1293 = vpop.f32.mrb[0].mxu0
        %1294 = vdwg.mxu0
        %v1295 = vmul.f32 %v1292, 0.001953125
        %v1296 = vadd.f32 %v1295, 1e-05
        %v1297 = vrsqrt.pop %v1296
        %v1298 = vlaneseq
        %v1299 = vshrl.u32 %v1298, 7
        %v1300 = vsub.s32 0, %v1299
        %v1301 = vrot.slane %v1297, %v1300
        %v1302 = vmul.f32 %v1214, %v1301
        %v1303 = vmul.f32 %v1215, %v1301
        %v1304 = vld [vmem:[#allocation6] sm:$0x1]
        %v1306 = vlaneseq
        %v1307 = vshrl.u32 %v1306, 7
        %v1308 = vsub.s32 0, %v1307
        %v1309 = vrot.slane %v1304, %v1308
        %v1311 = vmul.f32 %v1302, %v1309
        %v1312 = vmul.f32 %v1303, %v1309
        %v1313 = vld [vmem:[#allocation7] sm:$0x1]
        %v1315 = vlaneseq
        %v1316 = vshrl.u32 %v1315, 7
        %v1317 = vsub.s32 0, %v1316
        %v1318 = vrot.slane %v1313, %v1317
        %v1320 = vadd.f32 %v1311, %v1318
        %v1321 = vadd.f32 %v1312, %v1318
        %v1322 = vxor.u32 %v1320, 2147483648
        %v1323 = vxor.u32 %v1321, 2147483648
        %v1324 = vmul.f32 %v1322, 1.442695
        %v1325 = vpow.pop %v1324
        %v1326 = vmul.f32 %v1323, 1.442695
        %v1327 = vpow.pop %v1326
        %v1328 = vadd.f32 %v1325, 1.0
        %v1329 = vadd.f32 %v1327, 1.0
        %v1330 = vrcp.pop %v1328
        %v1331 = vmul.f32 1.0, %v1330
        %v1332 = vrcp.pop %v1329
        %v1333 = vmul.f32 1.0, %v1332
        %v1334 = vmul.f32 %v1320, %v1331
        %v1335 = vmul.f32 %v1321, %v1333
        %v1336 = vpack.c.bf16 %v1335, %v1334
        %v1337 = vld [vmem:[%s8] sm:$0xf]
        %v1338 = vld [vmem:[%s8 + $0x4] sm:$0xf]
        %v1339 = vld [vmem:[%s8 + $0x8] sm:$0xf]
        %v1340 = vld [vmem:[%s8 + $0xc] sm:$0xf]
        %v1341 = vld [vmem:[%s8 + $0x10] sm:$0xf]
        %v1342 = vld [vmem:[%s8 + $0x14] sm:$0xf]
        %v1343 = vld [vmem:[%s8 + $0x18] sm:$0xf]
        %v1344 = vld [vmem:[%s8 + $0x1c] sm:$0xf]
        %v1345 = vld [vmem:[%s8 + $0x20] sm:$0xf]
        %v1346 = vld [vmem:[%s8 + $0x24] sm:$0xf]
        %v1347 = vld [vmem:[%s8 + $0x28] sm:$0xf]
        %v1348 = vld [vmem:[%s8 + $0x2c] sm:$0xf]
        %v1349 = vld [vmem:[%s8 + $0x30] sm:$0xf]
        %v1350 = vld [vmem:[%s8 + $0x34] sm:$0xf]
        %v1351 = vld [vmem:[%s8 + $0x38] sm:$0xf]
        %v1352 = vld [vmem:[%s8 + $0x3c] sm:$0xf]
        %v1369 = vunpack.c.l.b16 %v1337
        %v1370 = vunpack.c.l.b16 %v1338
        %v1371 = vunpack.c.l.b16 %v1339
        %v1372 = vunpack.c.l.b16 %v1340
        %v1373 = vunpack.c.l.b16 %v1341
        %v1374 = vunpack.c.l.b16 %v1342
        %v1375 = vunpack.c.l.b16 %v1343
        %v1376 = vunpack.c.l.b16 %v1344
        %v1377 = vunpack.c.l.b16 %v1345
        %v1378 = vunpack.c.l.b16 %v1346
        %v1379 = vunpack.c.l.b16 %v1347
        %v1380 = vunpack.c.l.b16 %v1348
        %v1381 = vunpack.c.l.b16 %v1349
        %v1382 = vunpack.c.l.b16 %v1350
        %v1383 = vunpack.c.l.b16 %v1351
        %v1384 = vunpack.c.l.b16 %v1352
        %v1385 = vpack.c.b16 %v1370, %v1369
        %v1386 = vpack.c.b16 %v1372, %v1371
        %v1387 = vpack.c.b16 %v1374, %v1373
        %v1388 = vpack.c.b16 %v1376, %v1375
        %v1389 = vpack.c.b16 %v1378, %v1377
        %v1390 = vpack.c.b16 %v1380, %v1379
        %v1391 = vpack.c.b16 %v1382, %v1381
        %v1392 = vpack.c.b16 %v1384, %v1383
        %1401 = vmatprep.subr.bf16.mxu0 0
        %1402 = vmatpush1.bf16.msra.mxu0 %v1385
        %1403 = vmatprep.subr.bf16.mxu0 0
        %1404 = vmatpush1.bf16.msra.mxu0 %v1386
        %1405 = vmatprep.subr.bf16.mxu0 0
        %1406 = vmatpush1.bf16.msra.mxu0 %v1387
        %1407 = vmatprep.subr.bf16.mxu0 0
        %1408 = vmatpush1.bf16.msra.mxu0 %v1388
        %1409 = vmatprep.subr.bf16.mxu0 0
        %1410 = vmatpush1.bf16.msra.mxu0 %v1389
        %1411 = vmatprep.subr.bf16.mxu0 0
        %1412 = vmatpush1.bf16.msra.mxu0 %v1390
        %1413 = vmatprep.subr.bf16.mxu0 0
        %1414 = vmatpush1.bf16.msra.mxu0 %v1391
        %1415 = vmatprep.subr.bf16.mxu0 0
        %1416 = vmatpush1.bf16.msra.mxu0 %v1392
        %1417 = vmatprep.subr.bf16.mxu0 0
        %1418 = vmatpush1.bf16.msra.mxu0 0
        %1419 = vmatprep.subr.bf16.mxu0 0
        %1420 = vmatpush1.bf16.msra.mxu0 0
        %1421 = vmatprep.subr.bf16.mxu0 0
        %1422 = vmatpush1.bf16.msra.mxu0 0
        %1423 = vmatprep.subr.bf16.mxu0 0
        %1424 = vmatpush1.bf16.msra.mxu0 0
        %1425 = vmatprep.subr.bf16.mxu0 0
        %1426 = vmatpush1.bf16.msra.mxu0 0
        %1427 = vmatprep.subr.bf16.mxu0 0
        %1428 = vmatpush1.bf16.msra.mxu0 0
        %1429 = vmatprep.subr.bf16.mxu0 0
        %1430 = vmatpush1.bf16.msra.mxu0 0
        %1431 = vmatprep.subr.bf16.mxu0 0
        %1432 = vmatpush1.bf16.msra.mxu0 0
        %1433 = vmatprep.mubr.bf16.mxu0 0
        %1434 = vmatmul.mubr.bf16.gmra.mrb[0].mxu0 %v1336
        %v1435 = vpop.f32.mrb[0].mxu0
        %v1436 = vadd.f32 0.0, %v1435
        %v1437 = vpop.f32.mrb[0].mxu0
        %v1438 = vpop.f32.mrb[0].mxu0
        %v1439 = vadd.f32 0.0, %v1438
        %v1440 = vpop.f32.mrb[0].mxu0
        %1441 = vdwg.mxu0
        %s1442 = scalar_lea.vmem %s8, 64
        %v1443 = vld [vmem:[%s1442] sm:$0xf]
        %v1444 = vld [vmem:[%s1442 + $0x4] sm:$0xf]
        %v1445 = vld [vmem:[%s1442 + $0x8] sm:$0xf]
        %v1446 = vld [vmem:[%s1442 + $0xc] sm:$0xf]
        %v1447 = vld [vmem:[%s1442 + $0x10] sm:$0xf]
        %v1448 = vld [vmem:[%s1442 + $0x14] sm:$0xf]
        %v1449 = vld [vmem:[%s1442 + $0x18] sm:$0xf]
        %v1450 = vld [vmem:[%s1442 + $0x1c] sm:$0xf]
        %v1451 = vld [vmem:[%s1442 + $0x20] sm:$0xf]
        %v1452 = vld [vmem:[%s1442 + $0x24] sm:$0xf]
        %v1453 = vld [vmem:[%s1442 + $0x28] sm:$0xf]
        %v1454 = vld [vmem:[%s1442 + $0x2c] sm:$0xf]
        %v1455 = vld [vmem:[%s1442 + $0x30] sm:$0xf]
        %v1456 = vld [vmem:[%s1442 + $0x34] sm:$0xf]
        %v1457 = vld [vmem:[%s1442 + $0x38] sm:$0xf]
        %v1458 = vld [vmem:[%s1442 + $0x3c] sm:$0xf]
        %v1475 = vunpack.c.l.b16 %v1443
        %v1476 = vunpack.c.l.b16 %v1444
        %v1477 = vunpack.c.l.b16 %v1445
        %v1478 = vunpack.c.l.b16 %v1446
        %v1479 = vunpack.c.l.b16 %v1447
        %v1480 = vunpack.c.l.b16 %v1448
        %v1481 = vunpack.c.l.b16 %v1449
        %v1482 = vunpack.c.l.b16 %v1450
        %v1483 = vunpack.c.l.b16 %v1451
        %v1484 = vunpack.c.l.b16 %v1452
        %v1485 = vunpack.c.l.b16 %v1453
        %v1486 = vunpack.c.l.b16 %v1454
        %v1487 = vunpack.c.l.b16 %v1455
        %v1488 = vunpack.c.l.b16 %v1456
        %v1489 = vunpack.c.l.b16 %v1457
        %v1490 = vunpack.c.l.b16 %v1458
        %v1491 = vpack.c.b16 %v1476, %v1475
        %v1492 = vpack.c.b16 %v1478, %v1477
        %v1493 = vpack.c.b16 %v1480, %v1479
        %v1494 = vpack.c.b16 %v1482, %v1481
        %v1495 = vpack.c.b16 %v1484, %v1483
        %v1496 = vpack.c.b16 %v1486, %v1485
        %v1497 = vpack.c.b16 %v1488, %v1487
        %v1498 = vpack.c.b16 %v1490, %v1489
        %1507 = vmatprep.subr.bf16.mxu0 0
        %1508 = vmatpush1.bf16.msra.mxu0 %v1491
        %1509 = vmatprep.subr.bf16.mxu0 0
        %1510 = vmatpush1.bf16.msra.mxu0 %v1492
        %1511 = vmatprep.subr.bf16.mxu0 0
        %1512 = vmatpush1.bf16.msra.mxu0 %v1493
        %1513 = vmatprep.subr.bf16.mxu0 0
        %1514 = vmatpush1.bf16.msra.mxu0 %v1494
        %1515 = vmatprep.subr.bf16.mxu0 0
        %1516 = vmatpush1.bf16.msra.mxu0 %v1495
        %1517 = vmatprep.subr.bf16.mxu0 0
        %1518 = vmatpush1.bf16.msra.mxu0 %v1496
        %1519 = vmatprep.subr.bf16.mxu0 0
        %1520 = vmatpush1.bf16.msra.mxu0 %v1497
        %1521 = vmatprep.subr.bf16.mxu0 0
        %1522 = vmatpush1.bf16.msra.mxu0 %v1498
        %1523 = vmatprep.subr.bf16.mxu0 0
        %1524 = vmatpush1.bf16.msra.mxu0 0
        %1525 = vmatprep.subr.bf16.mxu0 0
        %1526 = vmatpush1.bf16.msra.mxu0 0
        %1527 = vmatprep.subr.bf16.mxu0 0
        %1528 = vmatpush1.bf16.msra.mxu0 0
        %1529 = vmatprep.subr.bf16.mxu0 0
        %1530 = vmatpush1.bf16.msra.mxu0 0
        %1531 = vmatprep.subr.bf16.mxu0 0
        %1532 = vmatpush1.bf16.msra.mxu0 0
        %1533 = vmatprep.subr.bf16.mxu0 0
        %1534 = vmatpush1.bf16.msra.mxu0 0
        %1535 = vmatprep.subr.bf16.mxu0 0
        %1536 = vmatpush1.bf16.msra.mxu0 0
        %1537 = vmatprep.subr.bf16.mxu0 0
        %1538 = vmatpush1.bf16.msra.mxu0 0
        %1539 = vmatprep.mubr.bf16.mxu0 0
        %1540 = vmatmul.mubr.bf16.gmra.mrb[0].mxu0 %v1336
        %v1541 = vpop.f32.mrb[0].mxu0
        %v1542 = vadd.f32 0.0, %v1541
        %v1543 = vpop.f32.mrb[0].mxu0
        %v1544 = vpop.f32.mrb[0].mxu0
        %v1545 = vadd.f32 0.0, %v1544
        %v1546 = vpop.f32.mrb[0].mxu0
        %1547 = vdwg.mxu0
        %s1548 = scalar_lea.vmem %s8, 128
        %v1549 = vld [vmem:[%s1548] sm:$0xf]
        %v1550 = vld [vmem:[%s1548 + $0x4] sm:$0xf]
        %v1551 = vld [vmem:[%s1548 + $0x8] sm:$0xf]
        %v1552 = vld [vmem:[%s1548 + $0xc] sm:$0xf]
        %v1553 = vld [vmem:[%s1548 + $0x10] sm:$0xf]
        %v1554 = vld [vmem:[%s1548 + $0x14] sm:$0xf]
        %v1555 = vld [vmem:[%s1548 + $0x18] sm:$0xf]
        %v1556 = vld [vmem:[%s1548 + $0x1c] sm:$0xf]
        %v1557 = vld [vmem:[%s1548 + $0x20] sm:$0xf]
        %v1558 = vld [vmem:[%s1548 + $0x24] sm:$0xf]
        %v1559 = vld [vmem:[%s1548 + $0x28] sm:$0xf]
        %v1560 = vld [vmem:[%s1548 + $0x2c] sm:$0xf]
        %v1561 = vld [vmem:[%s1548 + $0x30] sm:$0xf]
        %v1562 = vld [vmem:[%s1548 + $0x34] sm:$0xf]
        %v1563 = vld [vmem:[%s1548 + $0x38] sm:$0xf]
        %v1564 = vld [vmem:[%s1548 + $0x3c] sm:$0xf]
        %v1581 = vunpack.c.l.b16 %v1549
        %v1582 = vunpack.c.l.b16 %v1550
        %v1583 = vunpack.c.l.b16 %v1551
        %v1584 = vunpack.c.l.b16 %v1552
        %v1585 = vunpack.c.l.b16 %v1553
        %v1586 = vunpack.c.l.b16 %v1554
        %v1587 = vunpack.c.l.b16 %v1555
        %v1588 = vunpack.c.l.b16 %v1556
        %v1589 = vunpack.c.l.b16 %v1557
        %v1590 = vunpack.c.l.b16 %v1558
        %v1591 = vunpack.c.l.b16 %v1559
        %v1592 = vunpack.c.l.b16 %v1560
        %v1593 = vunpack.c.l.b16 %v1561
        %v1594 = vunpack.c.l.b16 %v1562
        %v1595 = vunpack.c.l.b16 %v1563
        %v1596 = vunpack.c.l.b16 %v1564
        %v1597 = vpack.c.b16 %v1582, %v1581
        %v1598 = vpack.c.b16 %v1584, %v1583
        %v1599 = vpack.c.b16 %v1586, %v1585
        %v1600 = vpack.c.b16 %v1588, %v1587
        %v1601 = vpack.c.b16 %v1590, %v1589
        %v1602 = vpack.c.b16 %v1592, %v1591
        %v1603 = vpack.c.b16 %v1594, %v1593
        %v1604 = vpack.c.b16 %v1596, %v1595
        %1613 = vmatprep.subr.bf16.mxu0 0
        %1614 = vmatpush1.bf16.msra.mxu0 %v1597
        %1615 = vmatprep.subr.bf16.mxu0 0
        %1616 = vmatpush1.bf16.msra.mxu0 %v1598
        %1617 = vmatprep.subr.bf16.mxu0 0
        %1618 = vmatpush1.bf16.msra.mxu0 %v1599
        %1619 = vmatprep.subr.bf16.mxu0 0
        %1620 = vmatpush1.bf16.msra.mxu0 %v1600
        %1621 = vmatprep.subr.bf16.mxu0 0
        %1622 = vmatpush1.bf16.msra.mxu0 %v1601
        %1623 = vmatprep.subr.bf16.mxu0 0
        %1624 = vmatpush1.bf16.msra.mxu0 %v1602
        %1625 = vmatprep.subr.bf16.mxu0 0
        %1626 = vmatpush1.bf16.msra.mxu0 %v1603
        %1627 = vmatprep.subr.bf16.mxu0 0
        %1628 = vmatpush1.bf16.msra.mxu0 %v1604
        %1629 = vmatprep.subr.bf16.mxu0 0
        %1630 = vmatpush1.bf16.msra.mxu0 0
        %1631 = vmatprep.subr.bf16.mxu0 0
        %1632 = vmatpush1.bf16.msra.mxu0 0
        %1633 = vmatprep.subr.bf16.mxu0 0
        %1634 = vmatpush1.bf16.msra.mxu0 0
        %1635 = vmatprep.subr.bf16.mxu0 0
        %1636 = vmatpush1.bf16.msra.mxu0 0
        %1637 = vmatprep.subr.bf16.mxu0 0
        %1638 = vmatpush1.bf16.msra.mxu0 0
        %1639 = vmatprep.subr.bf16.mxu0 0
        %1640 = vmatpush1.bf16.msra.mxu0 0
        %1641 = vmatprep.subr.bf16.mxu0 0
        %1642 = vmatpush1.bf16.msra.mxu0 0
        %1643 = vmatprep.subr.bf16.mxu0 0
        %1644 = vmatpush1.bf16.msra.mxu0 0
        %1645 = vmatprep.mubr.bf16.mxu0 0
        %1646 = vmatmul.mubr.bf16.gmra.mrb[0].mxu0 %v1336
        %v1647 = vpop.f32.mrb[0].mxu0
        %v1648 = vadd.f32 0.0, %v1647
        %v1649 = vpop.f32.mrb[0].mxu0
        %v1650 = vpop.f32.mrb[0].mxu0
        %v1651 = vadd.f32 0.0, %v1650
        %v1652 = vpop.f32.mrb[0].mxu0
        %1653 = vdwg.mxu0
        %1654 = vmatprep.subr.mxu0 0.0
        %1655 = vmatpush1.msra.mxu0 %v1436
        %1656 = vmatprep.subr.mxu0 0.0
        %1657 = vmatpush1.msra.mxu0 %v1439
        %1658 = vmatprep.subr.mxu0 0.0
        %1659 = vmatpush1.msra.mxu0 0.0
        %1660 = vmatprep.subr.mxu0 0.0
        %1661 = vmatpush1.msra.mxu0 0.0
        %1662 = vmatprep.subr.mxu0 0.0
        %1663 = vmatpush1.msra.mxu0 0.0
        %1664 = vmatprep.subr.mxu0 0.0
        %1665 = vmatpush1.msra.mxu0 0.0
        %1666 = vmatprep.subr.mxu0 0.0
        %1667 = vmatpush1.msra.mxu0 0.0
        %1668 = vmatprep.subr.mxu0 0.0
        %1669 = vmatpush1.msra.mxu0 0.0
        %1670 = vmatprep.subr.mxu0 0.0
        %1671 = vmatpush1.msra.mxu0 0.0
        %1672 = vmatprep.subr.mxu0 0.0
        %1673 = vmatpush1.msra.mxu0 0.0
        %1674 = vmatprep.subr.mxu0 0.0
        %1675 = vmatpush1.msra.mxu0 0.0
        %1676 = vmatprep.subr.mxu0 0.0
        %1677 = vmatpush1.msra.mxu0 0.0
        %1678 = vmatprep.subr.mxu0 0.0
        %1679 = vmatpush1.msra.mxu0 0.0
        %1680 = vmatprep.subr.mxu0 0.0
        %1681 = vmatpush1.msra.mxu0 0.0
        %1682 = vmatprep.subr.mxu0 0.0
        %1683 = vmatpush1.msra.mxu0 0.0
        %1684 = vmatprep.subr.mxu0 0.0
        %1685 = vmatpush1.msra.mxu0 0.0
        %1686 = vmatprep.subr.mxu0 0.0
        %1687 = vmatpush1.msra.mxu0 0.0
        %1688 = vmatprep.subr.mxu0 0.0
        %1689 = vmatpush1.msra.mxu0 0.0
        %1690 = vmatprep.subr.mxu0 0.0
        %1691 = vmatpush1.msra.mxu0 0.0
        %1692 = vmatprep.subr.mxu0 0.0
        %1693 = vmatpush1.msra.mxu0 0.0
        %1694 = vmatprep.subr.mxu0 0.0
        %1695 = vmatpush1.msra.mxu0 0.0
        %1696 = vmatprep.subr.mxu0 0.0
        %1697 = vmatpush1.msra.mxu0 0.0
        %1698 = vmatprep.subr.mxu0 0.0
        %1699 = vmatpush1.msra.mxu0 0.0
        %1700 = vmatprep.subr.mxu0 0.0
        %1701 = vmatpush1.msra.mxu0 0.0
        %1702 = vmatprep.subr.mxu0 0.0
        %1703 = vmatpush1.msra.mxu0 0.0
        %1704 = vmatprep.subr.mxu0 0.0
        %1705 = vmatpush1.msra.mxu0 0.0
        %1706 = vmatprep.subr.mxu0 0.0
        %1707 = vmatpush1.msra.mxu0 0.0
        %1708 = vmatprep.subr.mxu0 0.0
        %1709 = vmatpush1.msra.mxu0 0.0
        %1710 = vmatprep.subr.mxu0 0.0
        %1711 = vmatpush1.msra.mxu0 0.0
        %1712 = vmatprep.subr.mxu0 0.0
        %1713 = vmatpush1.msra.mxu0 0.0
        %1714 = vmatprep.subr.mxu0 0.0
        %1715 = vmatpush1.msra.mxu0 0.0
        %1716 = vmatprep.subr.mxu0 0.0
        %1717 = vmatpush1.msra.mxu0 0.0
        %1718 = vmatprep.mubr.f32.mxu0 0.0
        %1719 = vmatmul.mubr.f32.gmra.mrb[0].mxu0 %v944
        %v1720 = vpop.f32.mrb[0].mxu0
        %v1721 = vadd.f32 %v1542, %v1720
        %v1722 = vpop.f32.mrb[0].mxu0
        %1723 = vmatprep.mubr.f32.mxu0 0.0
        %1724 = vmatmul.mubr.f32.gmra.mrb[0].mxu0 %v947
        %v1725 = vpop.f32.mrb[0].mxu0
        %v1726 = vadd.f32 %v1545, %v1725
        %v1727 = vpop.f32.mrb[0].mxu0
        %1728 = vdwg.mxu0
        %1729 = vmatprep.subr.mxu0 0.0
        %1730 = vmatpush1.msra.mxu0 %v1648
        %1731 = vmatprep.subr.mxu0 0.0
        %1732 = vmatpush1.msra.mxu0 %v1651
        %1733 = vmatprep.subr.mxu0 0.0
        %1734 = vmatpush1.msra.mxu0 0.0
        %1735 = vmatprep.subr.mxu0 0.0
        %1736 = vmatpush1.msra.mxu0 0.0
        %1737 = vmatprep.subr.mxu0 0.0
        %1738 = vmatpush1.msra.mxu0 0.0
        %1739 = vmatprep.subr.mxu0 0.0
        %1740 = vmatpush1.msra.mxu0 0.0
        %1741 = vmatprep.subr.mxu0 0.0
        %1742 = vmatpush1.msra.mxu0 0.0
        %1743 = vmatprep.subr.mxu0 0.0
        %1744 = vmatpush1.msra.mxu0 0.0
        %1745 = vmatprep.subr.mxu0 0.0
        %1746 = vmatpush1.msra.mxu0 0.0
        %1747 = vmatprep.subr.mxu0 0.0
        %1748 = vmatpush1.msra.mxu0 0.0
        %1749 = vmatprep.subr.mxu0 0.0
        %1750 = vmatpush1.msra.mxu0 0.0
        %1751 = vmatprep.subr.mxu0 0.0
        %1752 = vmatpush1.msra.mxu0 0.0
        %1753 = vmatprep.subr.mxu0 0.0
        %1754 = vmatpush1.msra.mxu0 0.0
        %1755 = vmatprep.subr.mxu0 0.0
        %1756 = vmatpush1.msra.mxu0 0.0
        %1757 = vmatprep.subr.mxu0 0.0
        %1758 = vmatpush1.msra.mxu0 0.0
        %1759 = vmatprep.subr.mxu0 0.0
        %1760 = vmatpush1.msra.mxu0 0.0
        %1761 = vmatprep.subr.mxu0 0.0
        %1762 = vmatpush1.msra.mxu0 0.0
        %1763 = vmatprep.subr.mxu0 0.0
        %1764 = vmatpush1.msra.mxu0 0.0
        %1765 = vmatprep.subr.mxu0 0.0
        %1766 = vmatpush1.msra.mxu0 0.0
        %1767 = vmatprep.subr.mxu0 0.0
        %1768 = vmatpush1.msra.mxu0 0.0
        %1769 = vmatprep.subr.mxu0 0.0
        %1770 = vmatpush1.msra.mxu0 0.0
        %1771 = vmatprep.subr.mxu0 0.0
        %1772 = vmatpush1.msra.mxu0 0.0
        %1773 = vmatprep.subr.mxu0 0.0
        %1774 = vmatpush1.msra.mxu0 0.0
        %1775 = vmatprep.subr.mxu0 0.0
        %1776 = vmatpush1.msra.mxu0 0.0
        %1777 = vmatprep.subr.mxu0 0.0
        %1778 = vmatpush1.msra.mxu0 0.0
        %1779 = vmatprep.subr.mxu0 0.0
        %1780 = vmatpush1.msra.mxu0 0.0
        %1781 = vmatprep.subr.mxu0 0.0
        %1782 = vmatpush1.msra.mxu0 0.0
        %1783 = vmatprep.subr.mxu0 0.0
        %1784 = vmatpush1.msra.mxu0 0.0
        %1785 = vmatprep.subr.mxu0 0.0
        %1786 = vmatpush1.msra.mxu0 0.0
        %1787 = vmatprep.subr.mxu0 0.0
        %1788 = vmatpush1.msra.mxu0 0.0
        %1789 = vmatprep.subr.mxu0 0.0
        %1790 = vmatpush1.msra.mxu0 0.0
        %1791 = vmatprep.subr.mxu0 0.0
        %1792 = vmatpush1.msra.mxu0 0.0
        %1793 = vmatprep.mubr.f32.mxu0 0.0
        %1794 = vmatmul.mubr.f32.gmra.mrb[0].mxu0 %v1025
        %v1795 = vpop.f32.mrb[0].mxu0
        %v1796 = vadd.f32 0.0, %v1795
        %v1797 = vpop.f32.mrb[0].mxu0
        %1798 = vmatprep.mubr.f32.mxu0 0.0
        %1799 = vmatmul.mubr.f32.gmra.mrb[0].mxu0 %v1028
        %v1800 = vpop.f32.mrb[0].mxu0
        %v1801 = vadd.f32 0.0, %v1800
        %v1802 = vpop.f32.mrb[0].mxu0
        %1803 = vdwg.mxu0
        %v1804 = vadd.f32 %v1721, %v1796
        %v1805 = vadd.f32 %v1726, %v1801
        %v1806 = vld [vmem:[#allocation9] sm:$0x1]
        %v1808 = vlaneseq
        %v1809 = vshrl.u32 %v1808, 7
        %v1810 = vsub.s32 0, %v1809
        %v1811 = vrot.slane %v1806, %v1810
        %v1813 = vadd.f32 %v1804, %v1811
        %v1814 = vadd.f32 %v1805, %v1811
        %v1815 = vadd.f32 %v1813, %v1814
        %v1816 = vrot.slane %v1815, 4
        %v1817 = vadd.f32 %v1815, %v1816
        %v1818 = vrot.slane %v1817, 2
        %v1819 = vadd.f32 %v1817, %v1818
        %v1820 = vrot.slane %v1819, 1
        %v1821 = vadd.f32 %v1819, %v1820
        %1822 = vmatprep.subr.mxu0 0.0
        %1823 = vmatpush1.msra.mxu0 %v1123
        %1824 = vmatprep.subr.mxu0 0.0
        %1825 = vmatpush1.msra.mxu0 %v1124
        %1826 = vmatprep.subr.mxu0 0.0
        %1827 = vmatpush1.msra.mxu0 %v1125
        %1828 = vmatprep.subr.mxu0 0.0
        %1829 = vmatpush1.msra.mxu0 %v1126
        %1830 = vmatprep.subr.mxu0 0.0
        %1831 = vmatpush1.msra.mxu0 %v1127
        %1832 = vmatprep.subr.mxu0 0.0
        %1833 = vmatpush1.msra.mxu0 %v1128
        %1834 = vmatprep.subr.mxu0 0.0
        %1835 = vmatpush1.msra.mxu0 %v1129
        %1836 = vmatprep.subr.mxu0 0.0
        %1837 = vmatpush1.msra.mxu0 %v1130
        %1838 = vmatprep.subr.mxu0 0.0
        %1839 = vmatpush1.msra.mxu0 %v1131
        %1840 = vmatprep.subr.mxu0 0.0
        %1841 = vmatpush1.msra.mxu0 %v1132
        %1842 = vmatprep.subr.mxu0 0.0
        %1843 = vmatpush1.msra.mxu0 %v1133
        %1844 = vmatprep.subr.mxu0 0.0
        %1845 = vmatpush1.msra.mxu0 %v1134
        %1846 = vmatprep.subr.mxu0 0.0
        %1847 = vmatpush1.msra.mxu0 %v1135
        %1848 = vmatprep.subr.mxu0 0.0
        %1849 = vmatpush1.msra.mxu0 %v1136
        %1850 = vmatprep.subr.mxu0 0.0
        %1851 = vmatpush1.msra.mxu0 %v1137
        %1852 = vmatprep.subr.mxu0 0.0
        %1853 = vmatpush1.msra.mxu0 %v1138
        %1854 = vmatprep.subr.mxu0 0.0
        %1855 = vmatpush1.msra.mxu0 0.0
        %1856 = vmatprep.subr.mxu0 0.0
        %1857 = vmatpush1.msra.mxu0 0.0
        %1858 = vmatprep.subr.mxu0 0.0
        %1859 = vmatpush1.msra.mxu0 0.0
        %1860 = vmatprep.subr.mxu0 0.0
        %1861 = vmatpush1.msra.mxu0 0.0
        %1862 = vmatprep.subr.mxu0 0.0
        %1863 = vmatpush1.msra.mxu0 0.0
        %1864 = vmatprep.subr.mxu0 0.0
        %1865 = vmatpush1.msra.mxu0 0.0
        %1866 = vmatprep.subr.mxu0 0.0
        %1867 = vmatpush1.msra.mxu0 0.0
        %1868 = vmatprep.subr.mxu0 0.0
        %1869 = vmatpush1.msra.mxu0 0.0
        %1870 = vmatprep.subr.mxu0 0.0
        %1871 = vmatpush1.msra.mxu0 0.0
        %1872 = vmatprep.subr.mxu0 0.0
        %1873 = vmatpush1.msra.mxu0 0.0
        %1874 = vmatprep.subr.mxu0 0.0
        %1875 = vmatpush1.msra.mxu0 0.0
        %1876 = vmatprep.subr.mxu0 0.0
        %1877 = vmatpush1.msra.mxu0 0.0
        %1878 = vmatprep.subr.mxu0 0.0
        %1879 = vmatpush1.msra.mxu0 0.0
        %1880 = vmatprep.subr.mxu0 0.0
        %1881 = vmatpush1.msra.mxu0 0.0
        %1882 = vmatprep.subr.mxu0 0.0
        %1883 = vmatpush1.msra.mxu0 0.0
        %1884 = vmatprep.subr.mxu0 0.0
        %1885 = vmatpush1.msra.mxu0 0.0
        %1886 = vmatprep.mubr.f32.mxu0 0.0
        %1887 = vmatmul.mubr.f32.gmra.mrb[0].mxu0 %v1821
        %v1888 = vpop.f32.mrb[0].mxu0
        %v1889 = vadd.f32 0.0, %v1888
        %v1890 = vpop.f32.mrb[0].mxu0
        %1891 = vdwg.mxu0
        %v1892 = vmul.f32 %v1889, 0.001953125
        %v1893 = vlaneseq
        %v1894 = vshrl.u32 %v1893, 7
        %v1895 = vsub.s32 0, %v1894
        %v1896 = vrot.slane %v1892, %v1895
        %v1897 = vsub.f32 %v1813, %v1896
        %v1898 = vsub.f32 %v1814, %v1896
        %v1899 = vmul.f32 %v1897, %v1897
        %v1900 = vmul.f32 %v1898, %v1898
        %v1901 = vadd.f32 %v1899, %v1900
        %v1902 = vrot.slane %v1901, 4
        %v1903 = vadd.f32 %v1901, %v1902
        %v1904 = vrot.slane %v1903, 2
        %v1905 = vadd.f32 %v1903, %v1904
        %v1906 = vrot.slane %v1905, 1
        %v1907 = vadd.f32 %v1905, %v1906
        %1908 = vmatprep.subr.mxu0 0.0
        %1909 = vmatpush1.msra.mxu0 %v1123
        %1910 = vmatprep.subr.mxu0 0.0
        %1911 = vmatpush1.msra.mxu0 %v1124
        %1912 = vmatprep.subr.mxu0 0.0
        %1913 = vmatpush1.msra.mxu0 %v1125
        %1914 = vmatprep.subr.mxu0 0.0
        %1915 = vmatpush1.msra.mxu0 %v1126
        %1916 = vmatprep.subr.mxu0 0.0
        %1917 = vmatpush1.msra.mxu0 %v1127
        %1918 = vmatprep.subr.mxu0 0.0
        %1919 = vmatpush1.msra.mxu0 %v1128
        %1920 = vmatprep.subr.mxu0 0.0
        %1921 = vmatpush1.msra.mxu0 %v1129
        %1922 = vmatprep.subr.mxu0 0.0
        %1923 = vmatpush1.msra.mxu0 %v1130
        %1924 = vmatprep.subr.mxu0 0.0
        %1925 = vmatpush1.msra.mxu0 %v1131
        %1926 = vmatprep.subr.mxu0 0.0
        %1927 = vmatpush1.msra.mxu0 %v1132
        %1928 = vmatprep.subr.mxu0 0.0
        %1929 = vmatpush1.msra.mxu0 %v1133
        %1930 = vmatprep.subr.mxu0 0.0
        %1931 = vmatpush1.msra.mxu0 %v1134
        %1932 = vmatprep.subr.mxu0 0.0
        %1933 = vmatpush1.msra.mxu0 %v1135
        %1934 = vmatprep.subr.mxu0 0.0
        %1935 = vmatpush1.msra.mxu0 %v1136
        %1936 = vmatprep.subr.mxu0 0.0
        %1937 = vmatpush1.msra.mxu0 %v1137
        %1938 = vmatprep.subr.mxu0 0.0
        %1939 = vmatpush1.msra.mxu0 %v1138
        %1940 = vmatprep.subr.mxu0 0.0
        %1941 = vmatpush1.msra.mxu0 0.0
        %1942 = vmatprep.subr.mxu0 0.0
        %1943 = vmatpush1.msra.mxu0 0.0
        %1944 = vmatprep.subr.mxu0 0.0
        %1945 = vmatpush1.msra.mxu0 0.0
        %1946 = vmatprep.subr.mxu0 0.0
        %1947 = vmatpush1.msra.mxu0 0.0
        %1948 = vmatprep.subr.mxu0 0.0
        %1949 = vmatpush1.msra.mxu0 0.0
        %1950 = vmatprep.subr.mxu0 0.0
        %1951 = vmatpush1.msra.mxu0 0.0
        %1952 = vmatprep.subr.mxu0 0.0
        %1953 = vmatpush1.msra.mxu0 0.0
        %1954 = vmatprep.subr.mxu0 0.0
        %1955 = vmatpush1.msra.mxu0 0.0
        %1956 = vmatprep.subr.mxu0 0.0
        %1957 = vmatpush1.msra.mxu0 0.0
        %1958 = vmatprep.subr.mxu0 0.0
        %1959 = vmatpush1.msra.mxu0 0.0
        %1960 = vmatprep.subr.mxu0 0.0
        %1961 = vmatpush1.msra.mxu0 0.0
        %1962 = vmatprep.subr.mxu0 0.0
        %1963 = vmatpush1.msra.mxu0 0.0
        %1964 = vmatprep.subr.mxu0 0.0
        %1965 = vmatpush1.msra.mxu0 0.0
        %1966 = vmatprep.subr.mxu0 0.0
        %1967 = vmatpush1.msra.mxu0 0.0
        %1968 = vmatprep.subr.mxu0 0.0
        %1969 = vmatpush1.msra.mxu0 0.0
        %1970 = vmatprep.subr.mxu0 0.0
        %1971 = vmatpush1.msra.mxu0 0.0
        %1972 = vmatprep.mubr.f32.mxu0 0.0
        %1973 = vmatmul.mubr.f32.gmra.mrb[0].mxu0 %v1907
        %v1974 = vpop.f32.mrb[0].mxu0
        %v1975 = vadd.f32 0.0, %v1974
        %v1976 = vpop.f32.mrb[0].mxu0
        %1977 = vdwg.mxu0
        %v1978 = vmul.f32 %v1975, 0.001953125
        %v1979 = vadd.f32 %v1978, 1e-05
        %v1980 = vrsqrt.pop %v1979
        %v1981 = vlaneseq
        %v1982 = vshrl.u32 %v1981, 7
        %v1983 = vsub.s32 0, %v1982
        %v1984 = vrot.slane %v1980, %v1983
        %v1985 = vmul.f32 %v1897, %v1984
        %v1986 = vmul.f32 %v1898, %v1984
        %v1987 = vld [vmem:[%s10] sm:$0x1]
        %v1989 = vlaneseq
        %v1990 = vshrl.u32 %v1989, 7
        %v1991 = vsub.s32 0, %v1990
        %v1992 = vrot.slane %v1987, %v1991
        %v1994 = vmul.f32 %v1985, %v1992
        %v1995 = vmul.f32 %v1986, %v1992
        %v1996 = vld [vmem:[#allocation10] sm:$0x1]
        %v1998 = vlaneseq
        %v1999 = vshrl.u32 %v1998, 7
        %v2000 = vsub.s32 0, %v1999
        %v2001 = vrot.slane %v1996, %v2000
        %v2003 = vadd.f32 %v1994, %v2001
        %v2004 = vadd.f32 %v1995, %v2001
        %v2005 = vxor.u32 %v2003, 2147483648
        %v2006 = vxor.u32 %v2004, 2147483648
        %v2007 = vmul.f32 %v2005, 1.442695
        %v2008 = vpow.pop %v2007
        %v2009 = vmul.f32 %v2006, 1.442695
        %v2010 = vpow.pop %v2009
        %v2011 = vadd.f32 %v2008, 1.0
        %v2012 = vadd.f32 %v2010, 1.0
        %v2013 = vrcp.pop %v2011
        %v2014 = vmul.f32 1.0, %v2013
        %v2015 = vrcp.pop %v2012
        %v2016 = vmul.f32 1.0, %v2015
        %v2017 = vmul.f32 %v2003, %v2014
        %v2018 = vmul.f32 %v2004, %v2016
        %v2019 = vpack.c.bf16 %v709, %v708
        %v2020 = vld [vmem:[#allocation12] sm:$0xf]
        %v2021 = vld [vmem:[#allocation12 + $0x4] sm:$0xf]
        %v2022 = vld [vmem:[#allocation12 + $0x8] sm:$0xf]
        %v2023 = vld [vmem:[#allocation12 + $0xc] sm:$0xf]
        %v2024 = vld [vmem:[#allocation12 + $0x10] sm:$0xf]
        %v2025 = vld [vmem:[#allocation12 + $0x14] sm:$0xf]
        %v2026 = vld [vmem:[#allocation12 + $0x18] sm:$0xf]
        %v2027 = vld [vmem:[#allocation12 + $0x1c] sm:$0xf]
        %v2028 = vld [vmem:[#allocation13] sm:$0x1]
        %v2030 = vlaneseq
        %v2031 = vshrl.u32 %v2030, 7
        %v2032 = vsub.s32 0, %v2031
        %v2033 = vrot.slane %v2028, %v2032
        %v2043 = vunpack.c.l.b16 %v2020
        %v2044 = vunpack.c.l.b16 %v2021
        %v2045 = vunpack.c.l.b16 %v2022
        %v2046 = vunpack.c.l.b16 %v2023
        %v2047 = vunpack.c.l.b16 %v2024
        %v2048 = vunpack.c.l.b16 %v2025
        %v2049 = vunpack.c.l.b16 %v2026
        %v2050 = vunpack.c.l.b16 %v2027
        %v2051 = vpack.c.b16 %v2044, %v2043
        %v2052 = vpack.c.b16 %v2046, %v2045
        %v2053 = vpack.c.b16 %v2048, %v2047
        %v2054 = vpack.c.b16 %v2050, %v2049
        %v2060 = vsel %vm749, %v2019, 0
        %2062 = vmatprep.subr.bf16.mxu0 0
        %2063 = vmatpush1.bf16.msra.mxu0 %v2051
        %2064 = vmatprep.subr.bf16.mxu0 0
        %2065 = vmatpush1.bf16.msra.mxu0 %v2052
        %2066 = vmatprep.subr.bf16.mxu0 0
        %2067 = vmatpush1.bf16.msra.mxu0 %v2053
        %2068 = vmatprep.subr.bf16.mxu0 0
        %2069 = vmatpush1.bf16.msra.mxu0 %v2054
        %2070 = vmatprep.subr.bf16.mxu0 0
        %2071 = vmatpush1.bf16.msra.mxu0 0
        %2072 = vmatprep.subr.bf16.mxu0 0
        %2073 = vmatpush1.bf16.msra.mxu0 0
        %2074 = vmatprep.subr.bf16.mxu0 0
        %2075 = vmatpush1.bf16.msra.mxu0 0
        %2076 = vmatprep.subr.bf16.mxu0 0
        %2077 = vmatpush1.bf16.msra.mxu0 0
        %2078 = vmatprep.subr.bf16.mxu0 0
        %2079 = vmatpush1.bf16.msra.mxu0 0
        %2080 = vmatprep.subr.bf16.mxu0 0
        %2081 = vmatpush1.bf16.msra.mxu0 0
        %2082 = vmatprep.subr.bf16.mxu0 0
        %2083 = vmatpush1.bf16.msra.mxu0 0
        %2084 = vmatprep.subr.bf16.mxu0 0
        %2085 = vmatpush1.bf16.msra.mxu0 0
        %2086 = vmatprep.subr.bf16.mxu0 0
        %2087 = vmatpush1.bf16.msra.mxu0 0
        %2088 = vmatprep.subr.bf16.mxu0 0
        %2089 = vmatpush1.bf16.msra.mxu0 0
        %2090 = vmatprep.subr.bf16.mxu0 0
        %2091 = vmatpush1.bf16.msra.mxu0 0
        %2092 = vmatprep.subr.bf16.mxu0 0
        %2093 = vmatpush1.bf16.msra.mxu0 0
        %2094 = vmatprep.mubr.bf16.mxu0 0
        %2095 = vmatmul.mubr.bf16.gmra.mrb[0].mxu0 %v2060
        %v2096 = vpop.f32.mrb[0].mxu0
        %v2097 = vadd.f32 %v2033, %v2096
        %v2098 = vpop.f32.mrb[0].mxu0
        %v2099 = vpop.f32.mrb[0].mxu0
        %v2100 = vadd.f32 %v2033, %v2099
        %v2101 = vpop.f32.mrb[0].mxu0
        %2102 = vdwg.mxu0
        %v2103 = vadd.f32 %v2017, %v2097
        %v2104 = vadd.f32 %v2018, %v2100
        %2105 = vst [vmem:[%s597] sm:$0xff] %v2103
        %2106 = vst [vmem:[%s597 + $0x8] sm:$0xff] %v2104
        %p2107 = scmp.lt.s32.totalorder %s31, 1
        %s2108 = scalar_select %p2107, %s31, 1
        %s2109 = smul.addr %s2108, 2
        %s2110 = smul.addr %s2109, 8
        %s2111 = scalar_lea.vmem %s15, %s2110
        // Predicated region
        $region113: #{resnet_block_forward.1} parent=79 // pred_check
          %p2112 = pneg %p369
        $region114: #{resnet_block_forward.1} parent=79 // pred_check_branch
          %2114 = sbr.rel (%p2112) target = $region116
        $region115: #{resnet_block_forward.1} parent=79 // pred_region
          _
        $region116: #{resnet_block_forward.1} parent=79 // pred_fallthru
          _
      $region80: #{resnet_block_forward.1} parent=5 // pred_fallthru
        _
      %p2115 = scmp.le.s32.totalorder 2, %s26
      // Predicated region
      $region117: #{resnet_block_forward.1} parent=5 // pred_check
        %p2116 = pneg %p2115
      $region118: #{resnet_block_forward.1} parent=5 // pred_check_branch
        %2118 = sbr.rel (%p2116) target = $region120
      $region119: #{resnet_block_forward.1} parent=5 // pred_region
        %s2119 = ssub.s32 %s26, 2
        // Predicated region
        $region121: #{resnet_block_forward.1} parent=119 // pred_check
          %p2120 = pneg %p375
        $region122: #{resnet_block_forward.1} parent=119 // pred_check_branch
          %2122 = sbr.rel (%p2120) target = $region124
        $region123: #{resnet_block_forward.1} parent=119 // pred_region
          %p2123 = scmp.lt.s32.totalorder %s32, 1
          %s2124 = scalar_select %p2123, %s32, 1
          %s2125 = smul.addr %s2124, 2
          %s2126 = smul.addr %s2125, 8
          %s2127 = scalar_lea.vmem %s15, %s2126
        $region124: #{resnet_block_forward.1} parent=119 // pred_fallthru
          _
      $region120: #{resnet_block_forward.1} parent=5 // pred_fallthru
        _
    $region6: #{resnet_block_forward.1} parent=1 // loop_footer
      %s30 = sadd.s32 1, %s26
    $region7: #{resnet_block_forward.1} parent=1 // loop_footer_branch
      %25 = sbr.rel target = $region3
    $region8: #{resnet_block_forward.1} parent=1 // loop_exit
      _
    %2128 = vsyncpa [#allocation3], 1
    %s2129 = scalar_lea.sflag [#allocation3], 1
    %2130 = vsyncpa %s2129, 1
    %2131 = vsyncpa [#allocation5], 1
    %2132 = vsyncpa [#allocation8], 1
    %2133 = vsyncpa [#allocation11], 1
    %2134 = vsyncpa [#allocation14], 1

</llo_original>
